<compile_context>
chip_gen: v7x
topology: tpu7x:2x2x1
jax: 0.10.0
libtpu: 0.0.40
codegen_flags: <defaults>
</compile_context>

<pallas_src>
import math

import jax
import jax.numpy as jnp
from jax.experimental import pallas as pl
from jax.experimental.pallas import tpu as pltpu

# ---------------- model dimensions (small, synthetic) ----------------
BATCH = 2
T_FRAMES = 15          # spectrogram frames per example
SEQ = T_FRAMES + 1     # +1 CLS token slot
N_FFT_BINS = 64        # power-spectrogram frequency bins
N_MELS = 32            # mel bands
D_MODEL = 32           # encoder embedding dim
H_MLP = 64             # transformer MLP hidden
H_HEAD = 64            # classification-head hidden
C1 = 8                 # T1Head classes
C2 = 4                 # T2Head classes
LN_EPS = 1e-5
LANE = 128

# ---- static row offsets inside the packed matmul-weight slab (width LANE) ----
OFF_MELFB = 0                            # (F, N_MELS)
OFF_WIN = OFF_MELFB + N_FFT_BINS         # (N_MELS, D)
OFF_WKV = OFF_WIN + N_MELS               # (D, 2D)   lanes [0:D]=Wk, [D:2D]=Wv
OFF_WQ = OFF_WKV + D_MODEL               # (D, D)
OFF_WO = OFF_WQ + D_MODEL                # (D, D)
OFF_W1 = OFF_WO + D_MODEL                # (D, H_MLP)
OFF_W2 = OFF_W1 + D_MODEL                # (H_MLP, D)
OFF_WH1 = OFF_W2 + H_MLP                 # (D, 128)  lanes [0:64]=t1_w1, [64:128]=t2_w1
OFF_WH2 = OFF_WH1 + D_MODEL              # (128, 128) block-diag: t1_w2 / t2_w2
W_ROWS = OFF_WH2 + 2 * H_HEAD            # 448

# ---- static row offsets inside the packed vector slab (width LANE) ----
ROW_B_IN, ROW_BO = 0, 1
ROW_LN1G, ROW_LN1B = 2, 3
ROW_B1, ROW_B2 = 4, 5
ROW_LN2G, ROW_LN2B = 6, 7
ROW_BH1, ROW_BH2 = 8, 9                  # fused two-task head biases (128-wide)
ROW_CLS, ROW_POS0 = 10, 11
ROW_POSF = 16                            # pos[1:S] tiled per batch: rows 16 .. 16+B*T-1
VEC_ROWS = ROW_POSF + BATCH * T_FRAMES   # 46


def _layernorm(x, g, b, eps=LN_EPS):
    mu = jnp.mean(x, axis=-1, keepdims=True)
    xc = x - mu
    var = jnp.mean(xc * xc, axis=-1, keepdims=True)
    return xc * jax.lax.rsqrt(var + eps) * g + b


def task_challenger_kernel(x_ref, w_ref, v_ref, o_ref):
    """x_ref: (B*T, F) raw power-spectrogram rows (no padding, no CLS slot).
    w_ref: (W_ROWS, LANE) packed matmul weights.
    v_ref: (VEC_ROWS, LANE) packed biases / LN params / cls / pos.
    o_ref: (B, LANE) lane-dense logits: lanes [0:C1]=task1, [64:64+C2]=task2."""
    B, T, D = BATCH, T_FRAMES, D_MODEL
    BT = B * T

    x = x_ref[...]                                                    # (BT, F)

    # ---- LogMelEncoder: mel filterbank + log + input projection (all frames fused) ----
    melfb = w_ref[OFF_MELFB:OFF_MELFB + N_FFT_BINS, 0:N_MELS]         # (F, M)
    mel = jnp.dot(x, melfb, preferred_element_type=jnp.float32)       # (BT, M)
    logmel = jnp.log(mel + 1e-6)
    w_in = w_ref[OFF_WIN:OFF_WIN + N_MELS, 0:D]
    proj = (jnp.dot(logmel, w_in, preferred_element_type=jnp.float32)
            + v_ref[ROW_B_IN:ROW_B_IN + 1, 0:D])                      # (BT, D)

    # frame tokens (+ positional emb); CLS token handled analytically below
    frames = proj + v_ref[ROW_POSF:ROW_POSF + BT, 0:D]                # (BT, D)
    cls_tok = (v_ref[ROW_CLS:ROW_CLS + 1, 0:D]
               + v_ref[ROW_POS0:ROW_POS0 + 1, 0:D])                   # (1, D), same every batch

    # ---- single-head self-attention: query = CLS row only ----
    wkv = w_ref[OFF_WKV:OFF_WKV + D, 0:2 * D]                         # [Wk | Wv]
    kv_f = jnp.dot(frames, wkv, preferred_element_type=jnp.float32)   # (BT, 2D)
    kv_c = jnp.dot(cls_tok, wkv, preferred_element_type=jnp.float32)  # (1, 2D)
    k_f, v_f = kv_f[:, 0:D], kv_f[:, D:2 * D]
    k_c, v_c = kv_c[:, 0:D], kv_c[:, D:2 * D]

    wq = w_ref[OFF_WQ:OFF_WQ + D, 0:D]
    q = jnp.dot(cls_tok, wq, preferred_element_type=jnp.float32)      # (1, D)

    scale = 1.0 / math.sqrt(D)
    dn = (((1,), (1,)), ((), ()))                                     # contract last dims (no k.T)
    s_f = jax.lax.dot_general(q, k_f, dn, preferred_element_type=jnp.float32) * scale  # (1, BT)
    s_c = jax.lax.dot_general(q, k_c, dn, preferred_element_type=jnp.float32) * scale  # (1, 1)

    # block-diagonal batch mask: batch row b attends to frame columns [b*T, (b+1)*T)
    s_f = jnp.broadcast_to(s_f, (B, BT))
    col = jax.lax.broadcasted_iota(jnp.int32, (B, BT), 1)
    row = jax.lax.broadcasted_iota(jnp.int32, (B, BT), 0)
    in_batch = (col >= row * T) & (col < (row + 1) * T)
    s_f = jnp.where(in_batch, s_f, -1e30)
    s_cb = jnp.broadcast_to(s_c, (B, 1))

    # softmax over {CLS, masked frames}; CLS column handled as a separate term (exact)
    m = jnp.maximum(jnp.max(s_f, axis=-1, keepdims=True), s_cb)
    e_f = jnp.exp(s_f - m)
    e_c = jnp.exp(s_cb - m)
    denom = jnp.sum(e_f, axis=-1, keepdims=True) + e_c
    inv = pl.reciprocal(denom, approx=True)
    ctx = (jnp.dot(e_f, v_f, preferred_element_type=jnp.float32) + e_c * v_c) * inv   # (B, D)

    wo = w_ref[OFF_WO:OFF_WO + D, 0:D]
    attn_out = (jnp.dot(ctx, wo, preferred_element_type=jnp.float32)
                + v_ref[ROW_BO:ROW_BO + 1, 0:D])
    cls_b = jnp.broadcast_to(cls_tok, (B, D))
    x1 = _layernorm(cls_b + attn_out,
                    v_ref[ROW_LN1G:ROW_LN1G + 1, 0:D],
                    v_ref[ROW_LN1B:ROW_LN1B + 1, 0:D])                # (B, D)

    # ---- transformer MLP block (CLS rows only) ----
    w1 = w_ref[OFF_W1:OFF_W1 + D, 0:H_MLP]
    w2 = w_ref[OFF_W2:OFF_W2 + H_MLP, 0:D]
    h = jax.nn.gelu(jnp.dot(x1, w1, preferred_element_type=jnp.float32)
                    + v_ref[ROW_B1:ROW_B1 + 1, 0:H_MLP])
    mlp = jnp.dot(h, w2, preferred_element_type=jnp.float32) + v_ref[ROW_B2:ROW_B2 + 1, 0:D]
    x2 = _layernorm(x1 + mlp,
                    v_ref[ROW_LN2G:ROW_LN2G + 1, 0:D],
                    v_ref[ROW_LN2B:ROW_LN2B + 1, 0:D])                # (B, D)

    # ---- fused two-task classification head (block-diagonal second layer) ----
    wh1 = w_ref[OFF_WH1:OFF_WH1 + D, 0:LANE]                          # [t1_w1 | t2_w1]
    wh2 = w_ref[OFF_WH2:OFF_WH2 + 2 * H_HEAD, 0:LANE]                 # block-diag t1_w2 / t2_w2
    hh = jax.nn.relu(jnp.dot(x2, wh1, preferred_element_type=jnp.float32)
                     + v_ref[ROW_BH1:ROW_BH1 + 1, 0:LANE])            # (B, 128)
    logits = (jnp.dot(hh, wh2, preferred_element_type=jnp.float32)
              + v_ref[ROW_BH2:ROW_BH2 + 1, 0:LANE])                   # (B, 128)
    o_ref[...] = logits


def pack_params(params):
    """Pack all parameter tensors (both heads) into two lane-padded f32 slabs.
    Done once, outside the forward jit."""

    def place(slab, r0, c0, arr):
        r, c = arr.shape
        return slab.at[r0:r0 + r, c0:c0 + c].set(arr.astype(jnp.float32))

    w = jnp.zeros((W_ROWS, LANE), jnp.float32)
    w = place(w, OFF_MELFB, 0, params["mel_fb"])
    w = place(w, OFF_WIN, 0, params["w_in"])
    w = place(w, OFF_WKV, 0, params["wk"])            # lanes [0:D]
    w = place(w, OFF_WKV, D_MODEL, params["wv"])      # lanes [D:2D]
    w = place(w, OFF_WQ, 0, params["wq"])
    w = place(w, OFF_WO, 0, params["wo"])
    w = place(w, OFF_W1, 0, params["w1"])
    w = place(w, OFF_W2, 0, params["w2"])
    w = place(w, OFF_WH1, 0, params["t1_w1"])         # lanes [0:64]
    w = place(w, OFF_WH1, H_HEAD, params["t2_w1"])    # lanes [64:128]
    w = place(w, OFF_WH2, 0, params["t1_w2"])                     # rows [0:64],  lanes [0:C1]
    w = place(w, OFF_WH2 + H_HEAD, H_HEAD, params["t2_w2"])       # rows [64:128], lanes [64:64+C2]

    vec = jnp.zeros((VEC_ROWS, LANE), jnp.float32)
    vec = place(vec, ROW_B_IN, 0, params["b_in"])
    vec = place(vec, ROW_BO, 0, params["bo"])
    vec = place(vec, ROW_LN1G, 0, params["ln1_g"])
    vec = place(vec, ROW_LN1B, 0, params["ln1_b"])
    vec = place(vec, ROW_B1, 0, params["b1"])
    vec = place(vec, ROW_B2, 0, params["b2"])
    vec = place(vec, ROW_LN2G, 0, params["ln2_g"])
    vec = place(vec, ROW_LN2B, 0, params["ln2_b"])
    vec = place(vec, ROW_BH1, 0, params["t1_b1"])
    vec = place(vec, ROW_BH1, H_HEAD, params["t2_b1"])
    vec = place(vec, ROW_BH2, 0, params["t1_b2"])
    vec = place(vec, ROW_BH2, H_HEAD, params["t2_b2"])
    vec = place(vec, ROW_CLS, 0, params["cls"])
    vec = place(vec, ROW_POS0, 0, params["pos"][0:1, :])
    vec = place(vec, ROW_POSF, 0, jnp.tile(params["pos"][1:, :], (BATCH, 1)))
    return w, vec


@jax.jit
def task_challenger_forward_both(x, w_slab, vec_slab):
    """x: [B, T, F] power-spectrogram frames.
    Returns (task1_logits [B, C1], task2_logits [B, C2]) from ONE kernel launch."""
    B, T, F = x.shape
    x2d = x.reshape(B * T, F)   # row-major contiguous -> free bitcast, not a dispatch

    slab = pl.pallas_call(
        task_challenger_kernel,
        out_shape=jax.ShapeDtypeStruct((B, LANE), jnp.float32),
        # No grid: single invocation, whole arrays resident in VMEM (≈0.25 MiB total).
        in_specs=[
            pl.BlockSpec(memory_space=pltpu.MemorySpace.VMEM),
            pl.BlockSpec(memory_space=pltpu.MemorySpace.VMEM),
            pl.BlockSpec(memory_space=pltpu.MemorySpace.VMEM),
        ],
        out_specs=pl.BlockSpec(memory_space=pltpu.MemorySpace.VMEM),
    )(x2d, w_slab, vec_slab)

    # mirrors `x.squeeze(1)` in the PyTorch forward; drop the lane padding per task
    return slab[:, 0:C1], slab[:, H_HEAD:H_HEAD + C2]


def task_challenger_forward(x, w_slab, vec_slab, task_id):
    """Per-task view matching TaskChallenger(task_id).forward semantics."""
    out1, out2 = task_challenger_forward_both(x, w_slab, vec_slab)
    return out1 if task_id == 1 else out2


def init_params(key):
    ks = list(jax.random.split(key, 20))

    def nrm(k, shape, scale=0.05):
        return (jax.random.normal(k, shape, jnp.float32) * scale).astype(jnp.float32)

    return {
        "mel_fb": jnp.abs(nrm(ks[0], (N_FFT_BINS, N_MELS), 0.2)),
        "w_in": nrm(ks[1], (N_MELS, D_MODEL)),
        "b_in": jnp.zeros((1, D_MODEL), jnp.float32),
        "cls": nrm(ks[2], (1, D_MODEL), 0.02),
        "pos": nrm(ks[3], (SEQ, D_MODEL), 0.02),
        "wq": nrm(ks[4], (D_MODEL, D_MODEL)),
        "wk": nrm(ks[5], (D_MODEL, D_MODEL)),
        "wv": nrm(ks[6], (D_MODEL, D_MODEL)),
        "wo": nrm(ks[7], (D_MODEL, D_MODEL)),
        "bo": jnp.zeros((1, D_MODEL), jnp.float32),
        "ln1_g": jnp.ones((1, D_MODEL), jnp.float32),
        "ln1_b": jnp.zeros((1, D_MODEL), jnp.float32),
        "w1": nrm(ks[8], (D_MODEL, H_MLP)),
        "b1": jnp.zeros((1, H_MLP), jnp.float32),
        "w2": nrm(ks[9], (H_MLP, D_MODEL)),
        "b2": jnp.zeros((1, D_MODEL), jnp.float32),
        "ln2_g": jnp.ones((1, D_MODEL), jnp.float32),
        "ln2_b": jnp.zeros((1, D_MODEL), jnp.float32),
        # T1Head
        "t1_w1": nrm(ks[10], (D_MODEL, H_HEAD)),
        "t1_b1": jnp.zeros((1, H_HEAD), jnp.float32),
        "t1_w2": nrm(ks[11], (H_HEAD, C1)),
        "t1_b2": jnp.zeros((1, C1), jnp.float32),
        # T2Head
        "t2_w1": nrm(ks[12], (D_MODEL, H_HEAD)),
        "t2_b1": jnp.zeros((1, H_HEAD), jnp.float32),
        "t2_w2": nrm(ks[13], (H_HEAD, C2)),
        "t2_b2": jnp.zeros((1, C2), jnp.float32),
    }


if __name__ == "__main__":
    key = jax.random.PRNGKey(0)
    pkey, xkey = jax.random.split(key)
    params = init_params(pkey)

    # deterministic non-negative "power spectrogram" input  [B, T, F]
    x = jnp.square(jax.random.normal(xkey, (BATCH, T_FRAMES, N_FFT_BINS), jnp.float32))

    w_slab, v_slab = pack_params(params)   # packed once, outside jit; both heads included

    # ONE kernel launch computes both task heads (shared encoder).
    out1, out2 = task_challenger_forward_both(x, w_slab, v_slab)
    out1 = jax.block_until_ready(out1)
    out2 = jax.block_until_ready(out2)

    assert out1.shape == (BATCH, C1) and out1.dtype == jnp.float32
    assert out2.shape == (BATCH, C2) and out2.dtype == jnp.float32
    assert bool(jnp.all(jnp.isfinite(out1))) and bool(jnp.all(jnp.isfinite(out2)))

    # per-task wrapper (TaskChallenger(task_id=...) semantics) reuses the same launch
    t1 = jax.block_until_ready(task_challenger_forward(x, w_slab, v_slab, task_id=1))
    assert t1.shape == (BATCH, C1)

    print("KERNEL_OK")
</pallas_src>

<mosaic_0001>
module attributes {stable_mosaic.version = 11 : i64} {
  func.func @task_challenger_kernel(%arg0: memref<30x64xf32, #tpu.memory_space<vmem>>, %arg1: memref<448x128xf32, #tpu.memory_space<vmem>>, %arg2: memref<46x128xf32, #tpu.memory_space<vmem>>, %arg3: memref<2x128xf32, #tpu.memory_space<vmem>>) attributes {dimension_semantics = [], scalar_prefetch = 0 : i64, scratch_operands = 0 : i64, tpu.core_type = #tpu.core_type<tc>} {
    %c0 = arith.constant 0 : index
    %c0_0 = arith.constant 0 : index
    %0 = vector.load %arg0[%c0, %c0_0] : memref<30x64xf32, #tpu.memory_space<vmem>>, vector<30x64xf32>
    %c0_1 = arith.constant 0 : index
    %c0_2 = arith.constant 0 : index
    %1 = vector.load %arg1[%c0_1, %c0_2] : memref<448x128xf32, #tpu.memory_space<vmem>>, vector<64x32xf32>
    %cst = arith.constant dense<0.000000e+00> : vector<30x32xf32>
    %2 = tpu.matmul %0, %1, %cst {dimension_numbers = #tpu.dot_dimension_numbers<[1], [0], [0], [1], [0, 0, 1, 1], [], []>} : vector<30x64xf32>, vector<64x32xf32>, vector<30x32xf32> -> vector<30x32xf32>
    %cst_3 = arith.constant 9.99999997E-7 : f32
    %3 = vector.broadcast %cst_3 : f32 to vector<30x32xf32>
    %4 = arith.addf %2, %3 : vector<30x32xf32>
    %5 = math.log %4 : vector<30x32xf32>
    %c64 = arith.constant 64 : index
    %c0_4 = arith.constant 0 : index
    %6 = vector.load %arg1[%c64, %c0_4] : memref<448x128xf32, #tpu.memory_space<vmem>>, vector<32x32xf32>
    %cst_5 = arith.constant dense<0.000000e+00> : vector<30x32xf32>
    %7 = tpu.matmul %5, %6, %cst_5 {dimension_numbers = #tpu.dot_dimension_numbers<[1], [0], [0], [1], [0, 0, 1, 1], [], []>} : vector<30x32xf32>, vector<32x32xf32>, vector<30x32xf32> -> vector<30x32xf32>
    %c0_6 = arith.constant 0 : index
    %c0_7 = arith.constant 0 : index
    %8 = vector.load %arg2[%c0_6, %c0_7] : memref<46x128xf32, #tpu.memory_space<vmem>>, vector<1x32xf32>
    %9 = vector.broadcast %8 : vector<1x32xf32> to vector<30x32xf32>
    %10 = arith.addf %7, %9 : vector<30x32xf32>
    %c16 = arith.constant 16 : index
    %c0_8 = arith.constant 0 : index
    %11 = vector.load %arg2[%c16, %c0_8] : memref<46x128xf32, #tpu.memory_space<vmem>>, vector<30x32xf32>
    %12 = arith.addf %10, %11 : vector<30x32xf32>
    %c10 = arith.constant 10 : index
    %c0_9 = arith.constant 0 : index
    %13 = vector.load %arg2[%c10, %c0_9] : memref<46x128xf32, #tpu.memory_space<vmem>>, vector<1x32xf32>
    %c11 = arith.constant 11 : index
    %c0_10 = arith.constant 0 : index
    %14 = vector.load %arg2[%c11, %c0_10] : memref<46x128xf32, #tpu.memory_space<vmem>>, vector<1x32xf32>
    %15 = arith.addf %13, %14 : vector<1x32xf32>
    %c96 = arith.constant 96 : index
    %c0_11 = arith.constant 0 : index
    %16 = vector.load %arg1[%c96, %c0_11] : memref<448x128xf32, #tpu.memory_space<vmem>>, vector<32x64xf32>
    %cst_12 = arith.constant dense<0.000000e+00> : vector<30x64xf32>
    %17 = tpu.matmul %12, %16, %cst_12 {dimension_numbers = #tpu.dot_dimension_numbers<[1], [0], [0], [1], [0, 0, 1, 1], [], []>} : vector<30x32xf32>, vector<32x64xf32>, vector<30x64xf32> -> vector<30x64xf32>
    %cst_13 = arith.constant dense<0.000000e+00> : vector<1x64xf32>
    %18 = tpu.matmul %15, %16, %cst_13 {dimension_numbers = #tpu.dot_dimension_numbers<[1], [0], [0], [1], [0, 0, 1, 1], [], []>} : vector<1x32xf32>, vector<32x64xf32>, vector<1x64xf32> -> vector<1x64xf32>
    %19 = vector.extract_strided_slice %17 {offsets = [0, 0], sizes = [30, 32], strides = [1, 1]} : vector<30x64xf32> to vector<30x32xf32>
    %20 = vector.extract_strided_slice %17 {offsets = [0, 32], sizes = [30, 32], strides = [1, 1]} : vector<30x64xf32> to vector<30x32xf32>
    %21 = vector.extract_strided_slice %18 {offsets = [0, 0], sizes = [1, 32], strides = [1, 1]} : vector<1x64xf32> to vector<1x32xf32>
    %22 = vector.extract_strided_slice %18 {offsets = [0, 32], sizes = [1, 32], strides = [1, 1]} : vector<1x64xf32> to vector<1x32xf32>
    %c128 = arith.constant 128 : index
    %c0_14 = arith.constant 0 : index
    %23 = vector.load %arg1[%c128, %c0_14] : memref<448x128xf32, #tpu.memory_space<vmem>>, vector<32x32xf32>
    %cst_15 = arith.constant dense<0.000000e+00> : vector<1x32xf32>
    %24 = tpu.matmul %15, %23, %cst_15 {dimension_numbers = #tpu.dot_dimension_numbers<[1], [0], [0], [1], [0, 0, 1, 1], [], []>} : vector<1x32xf32>, vector<32x32xf32>, vector<1x32xf32> -> vector<1x32xf32>
    %cst_16 = arith.constant dense<0.000000e+00> : vector<1x30xf32>
    %25 = tpu.matmul %24, %19, %cst_16 {dimension_numbers = #tpu.dot_dimension_numbers<[1], [1], [0], [0], [0, 0, 1, 0], [], []>} : vector<1x32xf32>, vector<30x32xf32>, vector<1x30xf32> -> vector<1x30xf32>
    %cst_17 = arith.constant 0.176776692 : f32
    %26 = vector.broadcast %cst_17 : f32 to vector<1x30xf32>
    %27 = arith.mulf %25, %26 : vector<1x30xf32>
    %cst_18 = arith.constant dense<0.000000e+00> : vector<1x1xf32>
    %28 = tpu.matmul %24, %21, %cst_18 {dimension_numbers = #tpu.dot_dimension_numbers<[1], [1], [0], [0], [0, 0, 1, 0], [], []>} : vector<1x32xf32>, vector<1x32xf32>, vector<1x1xf32> -> vector<1x1xf32>
    %cst_19 = arith.constant 0.176776692 : f32
    %29 = vector.broadcast %cst_19 : f32 to vector<1x1xf32>
    %30 = arith.mulf %28, %29 : vector<1x1xf32>
    %31 = vector.shape_cast %27 : vector<1x30xf32> to vector<1x30xf32>
    %32 = vector.broadcast %31 : vector<1x30xf32> to vector<2x30xf32>
    %33 = tpu.iota {dimensions = array<i32: 1>} : vector<2x30xi32>
    %34 = tpu.iota {dimensions = array<i32: 0>} : vector<2x30xi32>
    %c15_i32 = arith.constant 15 : i32
    %35 = vector.broadcast %c15_i32 : i32 to vector<2x30xi32>
    %36 = arith.muli %34, %35 : vector<2x30xi32>
    %37 = arith.cmpi sge, %33, %36 : vector<2x30xi32>
    %c1_i32 = arith.constant 1 : i32
    %38 = vector.broadcast %c1_i32 : i32 to vector<2x30xi32>
    %39 = arith.addi %34, %38 : vector<2x30xi32>
    %c15_i32_20 = arith.constant 15 : i32
    %40 = vector.broadcast %c15_i32_20 : i32 to vector<2x30xi32>
    %41 = arith.muli %39, %40 : vector<2x30xi32>
    %42 = arith.cmpi slt, %33, %41 : vector<2x30xi32>
    %43 = arith.andi %37, %42 : vector<2x30xi1>
    %cst_21 = arith.constant -1.000000e+30 : f32
    %44 = vector.broadcast %cst_21 : f32 to vector<2x30xf32>
    %45 = arith.select %43, %32, %44 : vector<2x30xi1>, vector<2x30xf32>
    %46 = vector.shape_cast %30 : vector<1x1xf32> to vector<1x1xf32>
    %47 = vector.broadcast %46 : vector<1x1xf32> to vector<2x1xf32>
    %cst_22 = arith.constant dense<0xFF800000> : vector<2xf32>
    %48 = vector.multi_reduction <maximumf>, %45, %cst_22 [1] : vector<2x30xf32> to vector<2xf32>
    %49 = vector.shape_cast %48 : vector<2xf32> to vector<2x1xf32>
    %50 = arith.maximumf %49, %47 : vector<2x1xf32>
    %51 = vector.broadcast %50 : vector<2x1xf32> to vector<2x30xf32>
    %52 = arith.subf %45, %51 : vector<2x30xf32>
    %53 = math.exp %52 : vector<2x30xf32>
    %54 = arith.subf %47, %50 : vector<2x1xf32>
    %55 = math.exp %54 : vector<2x1xf32>
    %cst_23 = arith.constant dense<0.000000e+00> : vector<2xf32>
    %56 = vector.multi_reduction <add>, %53, %cst_23 [1] : vector<2x30xf32> to vector<2xf32>
    %57 = vector.shape_cast %56 : vector<2xf32> to vector<2x1xf32>
    %58 = arith.addf %57, %55 : vector<2x1xf32>
    %59 = tpu.reciprocal %58 {approx = true} : vector<2x1xf32> -> vector<2x1xf32>
    %cst_24 = arith.constant dense<0.000000e+00> : vector<2x32xf32>
    %60 = tpu.matmul %53, %20, %cst_24 {dimension_numbers = #tpu.dot_dimension_numbers<[1], [0], [0], [1], [0, 0, 1, 1], [], []>} : vector<2x30xf32>, vector<30x32xf32>, vector<2x32xf32> -> vector<2x32xf32>
    %61 = vector.broadcast %55 : vector<2x1xf32> to vector<2x32xf32>
    %62 = vector.broadcast %22 : vector<1x32xf32> to vector<2x32xf32>
    %63 = arith.mulf %61, %62 : vector<2x32xf32>
    %64 = arith.addf %60, %63 : vector<2x32xf32>
    %65 = vector.broadcast %59 : vector<2x1xf32> to vector<2x32xf32>
    %66 = arith.mulf %64, %65 : vector<2x32xf32>
    %c160 = arith.constant 160 : index
    %c0_25 = arith.constant 0 : index
    %67 = vector.load %arg1[%c160, %c0_25] : memref<448x128xf32, #tpu.memory_space<vmem>>, vector<32x32xf32>
    %cst_26 = arith.constant dense<0.000000e+00> : vector<2x32xf32>
    %68 = tpu.matmul %66, %67, %cst_26 {dimension_numbers = #tpu.dot_dimension_numbers<[1], [0], [0], [1], [0, 0, 1, 1], [], []>} : vector<2x32xf32>, vector<32x32xf32>, vector<2x32xf32> -> vector<2x32xf32>
    %c1 = arith.constant 1 : index
    %c0_27 = arith.constant 0 : index
    %69 = vector.load %arg2[%c1, %c0_27] : memref<46x128xf32, #tpu.memory_space<vmem>>, vector<1x32xf32>
    %70 = vector.broadcast %69 : vector<1x32xf32> to vector<2x32xf32>
    %71 = arith.addf %68, %70 : vector<2x32xf32>
    %72 = vector.shape_cast %15 : vector<1x32xf32> to vector<1x32xf32>
    %73 = vector.broadcast %72 : vector<1x32xf32> to vector<2x32xf32>
    %74 = arith.addf %73, %71 : vector<2x32xf32>
    %c2 = arith.constant 2 : index
    %c0_28 = arith.constant 0 : index
    %75 = vector.load %arg2[%c2, %c0_28] : memref<46x128xf32, #tpu.memory_space<vmem>>, vector<1x32xf32>
    %c3 = arith.constant 3 : index
    %c0_29 = arith.constant 0 : index
    %76 = vector.load %arg2[%c3, %c0_29] : memref<46x128xf32, #tpu.memory_space<vmem>>, vector<1x32xf32>
    %cst_30 = arith.constant dense<0.000000e+00> : vector<2xf32>
    %77 = vector.multi_reduction <add>, %74, %cst_30 [1] : vector<2x32xf32> to vector<2xf32>
    %78 = vector.shape_cast %77 : vector<2xf32> to vector<2x1xf32>
    %cst_31 = arith.constant 3.200000e+01 : f32
    %79 = vector.broadcast %cst_31 : f32 to vector<2x1xf32>
    %80 = arith.divf %78, %79 : vector<2x1xf32>
    %81 = vector.broadcast %80 : vector<2x1xf32> to vector<2x32xf32>
    %82 = arith.subf %74, %81 : vector<2x32xf32>
    %83 = arith.mulf %82, %82 : vector<2x32xf32>
    %cst_32 = arith.constant dense<0.000000e+00> : vector<2xf32>
    %84 = vector.multi_reduction <add>, %83, %cst_32 [1] : vector<2x32xf32> to vector<2xf32>
    %85 = vector.shape_cast %84 : vector<2xf32> to vector<2x1xf32>
    %cst_33 = arith.constant 3.200000e+01 : f32
    %86 = vector.broadcast %cst_33 : f32 to vector<2x1xf32>
    %87 = arith.divf %85, %86 : vector<2x1xf32>
    %cst_34 = arith.constant 9.99999974E-6 : f32
    %88 = vector.broadcast %cst_34 : f32 to vector<2x1xf32>
    %89 = arith.addf %87, %88 : vector<2x1xf32>
    %90 = math.rsqrt %89 : vector<2x1xf32>
    %91 = vector.broadcast %90 : vector<2x1xf32> to vector<2x32xf32>
    %92 = arith.mulf %82, %91 : vector<2x32xf32>
    %93 = vector.broadcast %75 : vector<1x32xf32> to vector<2x32xf32>
    %94 = arith.mulf %92, %93 : vector<2x32xf32>
    %95 = vector.broadcast %76 : vector<1x32xf32> to vector<2x32xf32>
    %96 = arith.addf %94, %95 : vector<2x32xf32>
    %c192 = arith.constant 192 : index
    %c0_35 = arith.constant 0 : index
    %97 = vector.load %arg1[%c192, %c0_35] : memref<448x128xf32, #tpu.memory_space<vmem>>, vector<32x64xf32>
    %c224 = arith.constant 224 : index
    %c0_36 = arith.constant 0 : index
    %98 = vector.load %arg1[%c224, %c0_36] : memref<448x128xf32, #tpu.memory_space<vmem>>, vector<64x32xf32>
    %cst_37 = arith.constant dense<0.000000e+00> : vector<2x64xf32>
    %99 = tpu.matmul %96, %97, %cst_37 {dimension_numbers = #tpu.dot_dimension_numbers<[1], [0], [0], [1], [0, 0, 1, 1], [], []>} : vector<2x32xf32>, vector<32x64xf32>, vector<2x64xf32> -> vector<2x64xf32>
    %c4 = arith.constant 4 : index
    %c0_38 = arith.constant 0 : index
    %100 = vector.load %arg2[%c4, %c0_38] : memref<46x128xf32, #tpu.memory_space<vmem>>, vector<1x64xf32>
    %101 = vector.broadcast %100 : vector<1x64xf32> to vector<2x64xf32>
    %102 = arith.addf %99, %101 : vector<2x64xf32>
    %103 = arith.mulf %102, %102 : vector<2x64xf32>
    %104 = arith.mulf %102, %103 : vector<2x64xf32>
    %cst_39 = arith.constant 4.471500e-02 : f32
    %105 = vector.broadcast %cst_39 : f32 to vector<2x64xf32>
    %106 = arith.mulf %105, %104 : vector<2x64xf32>
    %107 = arith.addf %102, %106 : vector<2x64xf32>
    %cst_40 = arith.constant 0.797884583 : f32
    %108 = vector.broadcast %cst_40 : f32 to vector<2x64xf32>
    %109 = arith.mulf %108, %107 : vector<2x64xf32>
    %110 = math.tanh %109 : vector<2x64xf32>
    %cst_41 = arith.constant 1.000000e+00 : f32
    %111 = vector.broadcast %cst_41 : f32 to vector<2x64xf32>
    %112 = arith.addf %111, %110 : vector<2x64xf32>
    %cst_42 = arith.constant 5.000000e-01 : f32
    %113 = vector.broadcast %cst_42 : f32 to vector<2x64xf32>
    %114 = arith.mulf %113, %112 : vector<2x64xf32>
    %115 = arith.mulf %102, %114 : vector<2x64xf32>
    %cst_43 = arith.constant dense<0.000000e+00> : vector<2x32xf32>
    %116 = tpu.matmul %115, %98, %cst_43 {dimension_numbers = #tpu.dot_dimension_numbers<[1], [0], [0], [1], [0, 0, 1, 1], [], []>} : vector<2x64xf32>, vector<64x32xf32>, vector<2x32xf32> -> vector<2x32xf32>
    %c5 = arith.constant 5 : index
    %c0_44 = arith.constant 0 : index
    %117 = vector.load %arg2[%c5, %c0_44] : memref<46x128xf32, #tpu.memory_space<vmem>>, vector<1x32xf32>
    %118 = vector.broadcast %117 : vector<1x32xf32> to vector<2x32xf32>
    %119 = arith.addf %116, %118 : vector<2x32xf32>
    %120 = arith.addf %96, %119 : vector<2x32xf32>
    %c6 = arith.constant 6 : index
    %c0_45 = arith.constant 0 : index
    %121 = vector.load %arg2[%c6, %c0_45] : memref<46x128xf32, #tpu.memory_space<vmem>>, vector<1x32xf32>
    %c7 = arith.constant 7 : index
    %c0_46 = arith.constant 0 : index
    %122 = vector.load %arg2[%c7, %c0_46] : memref<46x128xf32, #tpu.memory_space<vmem>>, vector<1x32xf32>
    %cst_47 = arith.constant dense<0.000000e+00> : vector<2xf32>
    %123 = vector.multi_reduction <add>, %120, %cst_47 [1] : vector<2x32xf32> to vector<2xf32>
    %124 = vector.shape_cast %123 : vector<2xf32> to vector<2x1xf32>
    %cst_48 = arith.constant 3.200000e+01 : f32
    %125 = vector.broadcast %cst_48 : f32 to vector<2x1xf32>
    %126 = arith.divf %124, %125 : vector<2x1xf32>
    %127 = vector.broadcast %126 : vector<2x1xf32> to vector<2x32xf32>
    %128 = arith.subf %120, %127 : vector<2x32xf32>
    %129 = arith.mulf %128, %128 : vector<2x32xf32>
    %cst_49 = arith.constant dense<0.000000e+00> : vector<2xf32>
    %130 = vector.multi_reduction <add>, %129, %cst_49 [1] : vector<2x32xf32> to vector<2xf32>
    %131 = vector.shape_cast %130 : vector<2xf32> to vector<2x1xf32>
    %cst_50 = arith.constant 3.200000e+01 : f32
    %132 = vector.broadcast %cst_50 : f32 to vector<2x1xf32>
    %133 = arith.divf %131, %132 : vector<2x1xf32>
    %cst_51 = arith.constant 9.99999974E-6 : f32
    %134 = vector.broadcast %cst_51 : f32 to vector<2x1xf32>
    %135 = arith.addf %133, %134 : vector<2x1xf32>
    %136 = math.rsqrt %135 : vector<2x1xf32>
    %137 = vector.broadcast %136 : vector<2x1xf32> to vector<2x32xf32>
    %138 = arith.mulf %128, %137 : vector<2x32xf32>
    %139 = vector.broadcast %121 : vector<1x32xf32> to vector<2x32xf32>
    %140 = arith.mulf %138, %139 : vector<2x32xf32>
    %141 = vector.broadcast %122 : vector<1x32xf32> to vector<2x32xf32>
    %142 = arith.addf %140, %141 : vector<2x32xf32>
    %c288 = arith.constant 288 : index
    %c0_52 = arith.constant 0 : index
    %143 = vector.load %arg1[%c288, %c0_52] : memref<448x128xf32, #tpu.memory_space<vmem>>, vector<32x128xf32>
    %c320 = arith.constant 320 : index
    %c0_53 = arith.constant 0 : index
    %144 = vector.load %arg1[%c320, %c0_53] : memref<448x128xf32, #tpu.memory_space<vmem>>, vector<128x128xf32>
    %cst_54 = arith.constant dense<0.000000e+00> : vector<2x128xf32>
    %145 = tpu.matmul %142, %143, %cst_54 {dimension_numbers = #tpu.dot_dimension_numbers<[1], [0], [0], [1], [0, 0, 1, 1], [], []>} : vector<2x32xf32>, vector<32x128xf32>, vector<2x128xf32> -> vector<2x128xf32>
    %c8 = arith.constant 8 : index
    %c0_55 = arith.constant 0 : index
    %146 = vector.load %arg2[%c8, %c0_55] : memref<46x128xf32, #tpu.memory_space<vmem>>, vector<1x128xf32>
    %147 = vector.broadcast %146 : vector<1x128xf32> to vector<2x128xf32>
    %148 = arith.addf %145, %147 : vector<2x128xf32>
    %cst_56 = arith.constant 0.000000e+00 : f32
    %149 = vector.broadcast %cst_56 : f32 to vector<2x128xf32>
    %150 = arith.maximumf %148, %149 : vector<2x128xf32>
    %cst_57 = arith.constant dense<0.000000e+00> : vector<2x128xf32>
    %151 = tpu.matmul %150, %144, %cst_57 {dimension_numbers = #tpu.dot_dimension_numbers<[1], [0], [0], [1], [0, 0, 1, 1], [], []>} : vector<2x128xf32>, vector<128x128xf32>, vector<2x128xf32> -> vector<2x128xf32>
    %c9 = arith.constant 9 : index
    %c0_58 = arith.constant 0 : index
    %152 = vector.load %arg2[%c9, %c0_58] : memref<46x128xf32, #tpu.memory_space<vmem>>, vector<1x128xf32>
    %153 = vector.broadcast %152 : vector<1x128xf32> to vector<2x128xf32>
    %154 = arith.addf %151, %153 : vector<2x128xf32>
    %c0_59 = arith.constant 0 : index
    %c0_60 = arith.constant 0 : index
    %155 = vector.load %arg3[%c0_59, %c0_60] : memref<2x128xf32, #tpu.memory_space<vmem>>, vector<2x128xf32>
    tpu.vector_store %arg3[%c0_59, %c0_60], %154 {strides = array<i32>} : memref<2x128xf32, #tpu.memory_space<vmem>>, vector<2x128xf32>,
    return
  }
}

</mosaic_0001>

<llo_original>
// kernel: task_challenger_forward_both.1
$region0: #{task_challenger_forward_both.1}
  #allocation0 [shape = 'u32[]', space=smem, size = 0x4, offset = 0x4, fixed_abs, tag = 'smem constant byte address 0x4 - core index']
  #allocation1 [shape = 'u32[144,128]{1,0:T(1,128)}', space=vmem, size = 0x12000, scoped, tag = 'internal scratch']
  %s0 = inlined_call_operand.vmem [shape: f32[30,64], index: 0, kind: input, shape index: {}]
  %s1 = inlined_call_operand.hbm [shape: f32[448,128], index: 1, kind: input, shape index: {}]
  %s2 = inlined_call_operand.vmem [shape: f32[46,128], index: 2, kind: input, shape index: {}]
  %s3 = inlined_call_operand.vmem [shape: f32[2,128], index: 3, kind: output, shape index: {}]
  %s4 = sld [smem:[#allocation0]]
  $region26: #{task_challenger_forward_both.1} parent=0
    _
  %s6 = ssub.s32 1, %s4
  %s7 = scalar_select 0, %s6, %s4
  $region1: #{task_challenger_forward_both.1} parent=0
    #allocation2 [shape = 'u8[229376]{0}', space=vmem, size = 0x38000, scoped, tag = 'input window, operand 1, single buffered']
    #allocation3 [shape = 's32[1]{0}', space=sflag, size = 0x4, scoped, tag = 'scoped memory for task_challenger_forward_both.1']
    %8 = vsyncpa [#allocation3], 0
    // Predicated region
    $region2: #{task_challenger_forward_both.1} parent=1 // pred_check
      _
    $region3: #{task_challenger_forward_both.1} parent=1 // pred_check_branch
      %10 = sbr.rel (0) target = $region5
    $region4: #{task_challenger_forward_both.1} parent=1 // pred_region
      _
    $region5: #{task_challenger_forward_both.1} parent=1 // pred_fallthru
      _
    // Predicated region
    $region6: #{task_challenger_forward_both.1} parent=1 // pred_check
      _
    $region7: #{task_challenger_forward_both.1} parent=1 // pred_check_branch
      %12 = sbr.rel (0) target = $region9
    $region8: #{task_challenger_forward_both.1} parent=1 // pred_region
      %s14 = ssub.s32 7168, 7168
      %15 = vsyncadd [#allocation3], %s14
      %s16 = sshll.u32 [#allocation2], 4
      %s17 = int_to_ptr.vmem [resolvable:$true] %s16
      %22 = dma.hbm_to_vmem [thread:$0]  %s1, 7168, %s17, [#allocation3], 128, 128, 8
    $region9: #{task_challenger_forward_both.1} parent=1 // pred_fallthru
      _
    // Predicated region
    $region10: #{task_challenger_forward_both.1} parent=1 // pred_check
      _
    $region11: #{task_challenger_forward_both.1} parent=1 // pred_check_branch
      %24 = sbr.rel (0) target = $region13
    $region12: #{task_challenger_forward_both.1} parent=1 // pred_region
      _
    $region13: #{task_challenger_forward_both.1} parent=1 // pred_fallthru
      _
    // Predicated region
    $region14: #{task_challenger_forward_both.1} parent=1 // pred_check
      _
    $region15: #{task_challenger_forward_both.1} parent=1 // pred_check_branch
      %26 = sbr.rel (0) target = $region17
    $region16: #{task_challenger_forward_both.1} parent=1 // pred_region
      %27 = dma.done [#allocation3], 7168
    $region17: #{task_challenger_forward_both.1} parent=1 // pred_fallthru
      _
    %v28 = vld [vmem:[%s0] sm:$0xff]
    %v29 = vld [vmem:[%s0 + $0x8] sm:$0xff]
    %v30 = vld [vmem:[%s0 + $0x10] sm:$0xff]
    %v31 = vld [vmem:[%s0 + $0x18] sm:$0x3f]
    %v32 = vld [vmem:[#allocation2] sm:$0xff]
    %v33 = vld [vmem:[#allocation2 + $0x8] sm:$0xff]
    %v34 = vld [vmem:[#allocation2 + $0x10] sm:$0xff]
    %v35 = vld [vmem:[#allocation2 + $0x18] sm:$0xff]
    %v36 = vld [vmem:[#allocation2 + $0x20] sm:$0xff]
    %v37 = vld [vmem:[#allocation2 + $0x28] sm:$0xff]
    %v38 = vld [vmem:[#allocation2 + $0x30] sm:$0xff]
    %v39 = vld [vmem:[#allocation2 + $0x38] sm:$0xff]
    %vm40 = vcmask 523264
    %v42 = vsel %vm40, %v28, 0
    %v45 = vsel %vm40, %v29, 0
    %v48 = vsel %vm40, %v30, 0
    %v51 = vsel %vm40, %v31, 0
    %53 = vmatprep.subr.mxu0 0.0
    %54 = vmatpush1.msra.mxu0 %v32
    %55 = vmatprep.subr.mxu0 0.0
    %56 = vmatpush1.msra.mxu0 %v33
    %57 = vmatprep.subr.mxu0 0.0
    %58 = vmatpush1.msra.mxu0 %v34
    %59 = vmatprep.subr.mxu0 0.0
    %60 = vmatpush1.msra.mxu0 %v35
    %61 = vmatprep.subr.mxu0 0.0
    %62 = vmatpush1.msra.mxu0 %v36
    %63 = vmatprep.subr.mxu0 0.0
    %64 = vmatpush1.msra.mxu0 %v37
    %65 = vmatprep.subr.mxu0 0.0
    %66 = vmatpush1.msra.mxu0 %v38
    %67 = vmatprep.subr.mxu0 0.0
    %68 = vmatpush1.msra.mxu0 %v39
    %69 = vmatprep.subr.mxu0 0.0
    %70 = vmatpush1.msra.mxu0 0.0
    %71 = vmatprep.subr.mxu0 0.0
    %72 = vmatpush1.msra.mxu0 0.0
    %73 = vmatprep.subr.mxu0 0.0
    %74 = vmatpush1.msra.mxu0 0.0
    %75 = vmatprep.subr.mxu0 0.0
    %76 = vmatpush1.msra.mxu0 0.0
    %77 = vmatprep.subr.mxu0 0.0
    %78 = vmatpush1.msra.mxu0 0.0
    %79 = vmatprep.subr.mxu0 0.0
    %80 = vmatpush1.msra.mxu0 0.0
    %81 = vmatprep.subr.mxu0 0.0
    %82 = vmatpush1.msra.mxu0 0.0
    %83 = vmatprep.subr.mxu0 0.0
    %84 = vmatpush1.msra.mxu0 0.0
    %85 = vmatprep.subr.mxu0 0.0
    %86 = vmatpush1.msra.mxu0 0.0
    %87 = vmatprep.subr.mxu0 0.0
    %88 = vmatpush1.msra.mxu0 0.0
    %89 = vmatprep.subr.mxu0 0.0
    %90 = vmatpush1.msra.mxu0 0.0
    %91 = vmatprep.subr.mxu0 0.0
    %92 = vmatpush1.msra.mxu0 0.0
    %93 = vmatprep.subr.mxu0 0.0
    %94 = vmatpush1.msra.mxu0 0.0
    %95 = vmatprep.subr.mxu0 0.0
    %96 = vmatpush1.msra.mxu0 0.0
    %97 = vmatprep.subr.mxu0 0.0
    %98 = vmatpush1.msra.mxu0 0.0
    %99 = vmatprep.subr.mxu0 0.0
    %100 = vmatpush1.msra.mxu0 0.0
    %101 = vmatprep.subr.mxu0 0.0
    %102 = vmatpush1.msra.mxu0 0.0
    %103 = vmatprep.subr.mxu0 0.0
    %104 = vmatpush1.msra.mxu0 0.0
    %105 = vmatprep.subr.mxu0 0.0
    %106 = vmatpush1.msra.mxu0 0.0
    %107 = vmatprep.subr.mxu0 0.0
    %108 = vmatpush1.msra.mxu0 0.0
    %109 = vmatprep.subr.mxu0 0.0
    %110 = vmatpush1.msra.mxu0 0.0
    %111 = vmatprep.subr.mxu0 0.0
    %112 = vmatpush1.msra.mxu0 0.0
    %113 = vmatprep.subr.mxu0 0.0
    %114 = vmatpush1.msra.mxu0 0.0
    %115 = vmatprep.subr.mxu0 0.0
    %116 = vmatpush1.msra.mxu0 0.0
    %117 = vmatprep.mubr.f32.mxu0 0.0
    %118 = vmatmul.mubr.f32.gmra.mrb[0].mxu0 %v42
    %v119 = vpop.f32.mrb[0].mxu0
    %v120 = vadd.f32 1e-06, %v119
    %v121 = vpop.f32.mrb[0].mxu0
    %122 = vmatprep.mubr.f32.mxu0 0.0
    %123 = vmatmul.mubr.f32.gmra.mrb[0].mxu0 %v45
    %v124 = vpop.f32.mrb[0].mxu0
    %v125 = vadd.f32 1e-06, %v124
    %v126 = vpop.f32.mrb[0].mxu0
    %127 = vmatprep.mubr.f32.mxu0 0.0
    %128 = vmatmul.mubr.f32.gmra.mrb[0].mxu0 %v48
    %v129 = vpop.f32.mrb[0].mxu0
    %v130 = vadd.f32 1e-06, %v129
    %v131 = vpop.f32.mrb[0].mxu0
    %132 = vmatprep.mubr.f32.mxu0 0.0
    %133 = vmatmul.mubr.f32.gmra.mrb[0].mxu0 %v51
    %v134 = vpop.f32.mrb[0].mxu0
    %v135 = vadd.f32 1e-06, %v134
    %v136 = vpop.f32.mrb[0].mxu0
    %137 = vdwg.mxu0
    %v138 = vlog2.pop %v120
    %v139 = vmul.f32 %v138, 0.6931472
    %v140 = vlog2.pop %v125
    %v141 = vmul.f32 %v140, 0.6931472
    %v142 = vlog2.pop %v130
    %v143 = vmul.f32 %v142, 0.6931472
    %v144 = vlog2.pop %v135
    %v145 = vmul.f32 %v144, 0.6931472
    %v146 = vld [vmem:[#allocation2 + $0x40] sm:$0xff]
    %v147 = vld [vmem:[#allocation2 + $0x48] sm:$0xff]
    %v148 = vld [vmem:[#allocation2 + $0x50] sm:$0xff]
    %v149 = vld [vmem:[#allocation2 + $0x58] sm:$0xff]
    %v150 = vld [vmem:[%s2] sm:$0x1]
    %v151 = vlaneseq
    %v152 = vshrl.u32 %v151, 7
    %v153 = vsub.s32 0, %v152
    %v154 = vrot.slane %v150, %v153
    %vm155 = vcmask 261120
    %v157 = vsel %vm155, %v139, 0
    %v160 = vsel %vm155, %v141, 0
    %v163 = vsel %vm155, %v143, 0
    %v166 = vsel %vm155, %v145, 0
    %168 = vmatprep.subr.mxu0 0.0
    %169 = vmatpush1.msra.mxu0 %v146
    %170 = vmatprep.subr.mxu0 0.0
    %171 = vmatpush1.msra.mxu0 %v147
    %172 = vmatprep.subr.mxu0 0.0
    %173 = vmatpush1.msra.mxu0 %v148
    %174 = vmatprep.subr.mxu0 0.0
    %175 = vmatpush1.msra.mxu0 %v149
    %176 = vmatprep.subr.mxu0 0.0
    %177 = vmatpush1.msra.mxu0 0.0
    %178 = vmatprep.subr.mxu0 0.0
    %179 = vmatpush1.msra.mxu0 0.0
    %180 = vmatprep.subr.mxu0 0.0
    %181 = vmatpush1.msra.mxu0 0.0
    %182 = vmatprep.subr.mxu0 0.0
    %183 = vmatpush1.msra.mxu0 0.0
    %184 = vmatprep.subr.mxu0 0.0
    %185 = vmatpush1.msra.mxu0 0.0
    %186 = vmatprep.subr.mxu0 0.0
    %187 = vmatpush1.msra.mxu0 0.0
    %188 = vmatprep.subr.mxu0 0.0
    %189 = vmatpush1.msra.mxu0 0.0
    %190 = vmatprep.subr.mxu0 0.0
    %191 = vmatpush1.msra.mxu0 0.0
    %192 = vmatprep.subr.mxu0 0.0
    %193 = vmatpush1.msra.mxu0 0.0
    %194 = vmatprep.subr.mxu0 0.0
    %195 = vmatpush1.msra.mxu0 0.0
    %196 = vmatprep.subr.mxu0 0.0
    %197 = vmatpush1.msra.mxu0 0.0
    %198 = vmatprep.subr.mxu0 0.0
    %199 = vmatpush1.msra.mxu0 0.0
    %200 = vmatprep.subr.mxu0 0.0
    %201 = vmatpush1.msra.mxu0 0.0
    %202 = vmatprep.subr.mxu0 0.0
    %203 = vmatpush1.msra.mxu0 0.0
    %204 = vmatprep.subr.mxu0 0.0
    %205 = vmatpush1.msra.mxu0 0.0
    %206 = vmatprep.subr.mxu0 0.0
    %207 = vmatpush1.msra.mxu0 0.0
    %208 = vmatprep.subr.mxu0 0.0
    %209 = vmatpush1.msra.mxu0 0.0
    %210 = vmatprep.subr.mxu0 0.0
    %211 = vmatpush1.msra.mxu0 0.0
    %212 = vmatprep.subr.mxu0 0.0
    %213 = vmatpush1.msra.mxu0 0.0
    %214 = vmatprep.subr.mxu0 0.0
    %215 = vmatpush1.msra.mxu0 0.0
    %216 = vmatprep.subr.mxu0 0.0
    %217 = vmatpush1.msra.mxu0 0.0
    %218 = vmatprep.subr.mxu0 0.0
    %219 = vmatpush1.msra.mxu0 0.0
    %220 = vmatprep.subr.mxu0 0.0
    %221 = vmatpush1.msra.mxu0 0.0
    %222 = vmatprep.subr.mxu0 0.0
    %223 = vmatpush1.msra.mxu0 0.0
    %224 = vmatprep.subr.mxu0 0.0
    %225 = vmatpush1.msra.mxu0 0.0
    %226 = vmatprep.subr.mxu0 0.0
    %227 = vmatpush1.msra.mxu0 0.0
    %228 = vmatprep.subr.mxu0 0.0
    %229 = vmatpush1.msra.mxu0 0.0
    %230 = vmatprep.subr.mxu0 0.0
    %231 = vmatpush1.msra.mxu0 0.0
    %232 = vmatprep.mubr.f32.mxu0 0.0
    %233 = vmatmul.mubr.f32.gmra.mrb[0].mxu0 %v157
    %v234 = vpop.f32.mrb[0].mxu0
    %v235 = vadd.f32 %v154, %v234
    %v236 = vpop.f32.mrb[0].mxu0
    %237 = vmatprep.mubr.f32.mxu0 0.0
    %238 = vmatmul.mubr.f32.gmra.mrb[0].mxu0 %v160
    %v239 = vpop.f32.mrb[0].mxu0
    %v240 = vadd.f32 %v154, %v239
    %v241 = vpop.f32.mrb[0].mxu0
    %242 = vmatprep.mubr.f32.mxu0 0.0
    %243 = vmatmul.mubr.f32.gmra.mrb[0].mxu0 %v163
    %v244 = vpop.f32.mrb[0].mxu0
    %v245 = vadd.f32 %v154, %v244
    %v246 = vpop.f32.mrb[0].mxu0
    %247 = vmatprep.mubr.f32.mxu0 0.0
    %248 = vmatmul.mubr.f32.gmra.mrb[0].mxu0 %v166
    %v249 = vpop.f32.mrb[0].mxu0
    %v250 = vadd.f32 %v154, %v249
    %v251 = vpop.f32.mrb[0].mxu0
    %252 = vdwg.mxu0
    %v253 = vld [vmem:[%s2 + $0x10] sm:$0xff]
    %v254 = vld [vmem:[%s2 + $0x18] sm:$0xff]
    %v255 = vld [vmem:[%s2 + $0x20] sm:$0xff]
    %v256 = vld [vmem:[%s2 + $0x28] sm:$0x3f]
    %v257 = vadd.f32 %v235, %v253
    %v258 = vadd.f32 %v240, %v254
    %v259 = vadd.f32 %v245, %v255
    %v260 = vadd.f32 %v250, %v256
    %v261 = vld [vmem:[%s2 + $0xa] sm:$0x1]
    %v262 = vld [vmem:[%s2 + $0xb] sm:$0x1]
    %v263 = vadd.f32 %v261, %v262
    %v264 = vld [vmem:[#allocation2 + $0x60] sm:$0xff]
    %v265 = vld [vmem:[#allocation2 + $0x68] sm:$0xff]
    %v266 = vld [vmem:[#allocation2 + $0x70] sm:$0xff]
    %v267 = vld [vmem:[#allocation2 + $0x78] sm:$0xff]
    %v269 = vsel %vm155, %v257, 0
    %v272 = vsel %vm155, %v258, 0
    %v275 = vsel %vm155, %v259, 0
    %v278 = vsel %vm155, %v260, 0
    %280 = vmatprep.subr.mxu0 0.0
    %281 = vmatpush1.msra.mxu0 %v264
    %282 = vmatprep.subr.mxu0 0.0
    %283 = vmatpush1.msra.mxu0 %v265
    %284 = vmatprep.subr.mxu0 0.0
    %285 = vmatpush1.msra.mxu0 %v266
    %286 = vmatprep.subr.mxu0 0.0
    %287 = vmatpush1.msra.mxu0 %v267
    %288 = vmatprep.subr.mxu0 0.0
    %289 = vmatpush1.msra.mxu0 0.0
    %290 = vmatprep.subr.mxu0 0.0
    %291 = vmatpush1.msra.mxu0 0.0
    %292 = vmatprep.subr.mxu0 0.0
    %293 = vmatpush1.msra.mxu0 0.0
    %294 = vmatprep.subr.mxu0 0.0
    %295 = vmatpush1.msra.mxu0 0.0
    %296 = vmatprep.subr.mxu0 0.0
    %297 = vmatpush1.msra.mxu0 0.0
    %298 = vmatprep.subr.mxu0 0.0
    %299 = vmatpush1.msra.mxu0 0.0
    %300 = vmatprep.subr.mxu0 0.0
    %301 = vmatpush1.msra.mxu0 0.0
    %302 = vmatprep.subr.mxu0 0.0
    %303 = vmatpush1.msra.mxu0 0.0
    %304 = vmatprep.subr.mxu0 0.0
    %305 = vmatpush1.msra.mxu0 0.0
    %306 = vmatprep.subr.mxu0 0.0
    %307 = vmatpush1.msra.mxu0 0.0
    %308 = vmatprep.subr.mxu0 0.0
    %309 = vmatpush1.msra.mxu0 0.0
    %310 = vmatprep.subr.mxu0 0.0
    %311 = vmatpush1.msra.mxu0 0.0
    %312 = vmatprep.subr.mxu0 0.0
    %313 = vmatpush1.msra.mxu0 0.0
    %314 = vmatprep.subr.mxu0 0.0
    %315 = vmatpush1.msra.mxu0 0.0
    %316 = vmatprep.subr.mxu0 0.0
    %317 = vmatpush1.msra.mxu0 0.0
    %318 = vmatprep.subr.mxu0 0.0
    %319 = vmatpush1.msra.mxu0 0.0
    %320 = vmatprep.subr.mxu0 0.0
    %321 = vmatpush1.msra.mxu0 0.0
    %322 = vmatprep.subr.mxu0 0.0
    %323 = vmatpush1.msra.mxu0 0.0
    %324 = vmatprep.subr.mxu0 0.0
    %325 = vmatpush1.msra.mxu0 0.0
    %326 = vmatprep.subr.mxu0 0.0
    %327 = vmatpush1.msra.mxu0 0.0
    %328 = vmatprep.subr.mxu0 0.0
    %329 = vmatpush1.msra.mxu0 0.0
    %330 = vmatprep.subr.mxu0 0.0
    %331 = vmatpush1.msra.mxu0 0.0
    %332 = vmatprep.subr.mxu0 0.0
    %333 = vmatpush1.msra.mxu0 0.0
    %334 = vmatprep.subr.mxu0 0.0
    %335 = vmatpush1.msra.mxu0 0.0
    %336 = vmatprep.subr.mxu0 0.0
    %337 = vmatpush1.msra.mxu0 0.0
    %338 = vmatprep.subr.mxu0 0.0
    %339 = vmatpush1.msra.mxu0 0.0
    %340 = vmatprep.subr.mxu0 0.0
    %341 = vmatpush1.msra.mxu0 0.0
    %342 = vmatprep.subr.mxu0 0.0
    %343 = vmatpush1.msra.mxu0 0.0
    %344 = vmatprep.mubr.f32.mxu0 0.0
    %345 = vmatmul.mubr.f32.gmra.mrb[0].mxu0 %v269
    %v346 = vpop.f32.mrb[0].mxu0
    %v347 = vadd.f32 0.0, %v346
    %v348 = vpop.f32.mrb[0].mxu0
    %349 = vmatprep.mubr.f32.mxu0 0.0
    %350 = vmatmul.mubr.f32.gmra.mrb[0].mxu0 %v272
    %v351 = vpop.f32.mrb[0].mxu0
    %v352 = vadd.f32 0.0, %v351
    %v353 = vpop.f32.mrb[0].mxu0
    %354 = vmatprep.mubr.f32.mxu0 0.0
    %355 = vmatmul.mubr.f32.gmra.mrb[0].mxu0 %v275
    %v356 = vpop.f32.mrb[0].mxu0
    %v357 = vadd.f32 0.0, %v356
    %v358 = vpop.f32.mrb[0].mxu0
    %359 = vmatprep.mubr.f32.mxu0 0.0
    %360 = vmatmul.mubr.f32.gmra.mrb[0].mxu0 %v278
    %v361 = vpop.f32.mrb[0].mxu0
    %v362 = vadd.f32 0.0, %v361
    %v363 = vpop.f32.mrb[0].mxu0
    %364 = vdwg.mxu0
    %v366 = vsel %vm155, %v263, 0
    %368 = vmatprep.subr.mxu0 0.0
    %369 = vmatpush1.msra.mxu0 %v264
    %370 = vmatprep.subr.mxu0 0.0
    %371 = vmatpush1.msra.mxu0 %v265
    %372 = vmatprep.subr.mxu0 0.0
    %373 = vmatpush1.msra.mxu0 %v266
    %374 = vmatprep.subr.mxu0 0.0
    %375 = vmatpush1.msra.mxu0 %v267
    %376 = vmatprep.subr.mxu0 0.0
    %377 = vmatpush1.msra.mxu0 0.0
    %378 = vmatprep.subr.mxu0 0.0
    %379 = vmatpush1.msra.mxu0 0.0
    %380 = vmatprep.subr.mxu0 0.0
    %381 = vmatpush1.msra.mxu0 0.0
    %382 = vmatprep.subr.mxu0 0.0
    %383 = vmatpush1.msra.mxu0 0.0
    %384 = vmatprep.subr.mxu0 0.0
    %385 = vmatpush1.msra.mxu0 0.0
    %386 = vmatprep.subr.mxu0 0.0
    %387 = vmatpush1.msra.mxu0 0.0
    %388 = vmatprep.subr.mxu0 0.0
    %389 = vmatpush1.msra.mxu0 0.0
    %390 = vmatprep.subr.mxu0 0.0
    %391 = vmatpush1.msra.mxu0 0.0
    %392 = vmatprep.subr.mxu0 0.0
    %393 = vmatpush1.msra.mxu0 0.0
    %394 = vmatprep.subr.mxu0 0.0
    %395 = vmatpush1.msra.mxu0 0.0
    %396 = vmatprep.subr.mxu0 0.0
    %397 = vmatpush1.msra.mxu0 0.0
    %398 = vmatprep.subr.mxu0 0.0
    %399 = vmatpush1.msra.mxu0 0.0
    %400 = vmatprep.subr.mxu0 0.0
    %401 = vmatpush1.msra.mxu0 0.0
    %402 = vmatprep.subr.mxu0 0.0
    %403 = vmatpush1.msra.mxu0 0.0
    %404 = vmatprep.subr.mxu0 0.0
    %405 = vmatpush1.msra.mxu0 0.0
    %406 = vmatprep.subr.mxu0 0.0
    %407 = vmatpush1.msra.mxu0 0.0
    %408 = vmatprep.subr.mxu0 0.0
    %409 = vmatpush1.msra.mxu0 0.0
    %410 = vmatprep.subr.mxu0 0.0
    %411 = vmatpush1.msra.mxu0 0.0
    %412 = vmatprep.subr.mxu0 0.0
    %413 = vmatpush1.msra.mxu0 0.0
    %414 = vmatprep.subr.mxu0 0.0
    %415 = vmatpush1.msra.mxu0 0.0
    %416 = vmatprep.subr.mxu0 0.0
    %417 = vmatpush1.msra.mxu0 0.0
    %418 = vmatprep.subr.mxu0 0.0
    %419 = vmatpush1.msra.mxu0 0.0
    %420 = vmatprep.subr.mxu0 0.0
    %421 = vmatpush1.msra.mxu0 0.0
    %422 = vmatprep.subr.mxu0 0.0
    %423 = vmatpush1.msra.mxu0 0.0
    %424 = vmatprep.subr.mxu0 0.0
    %425 = vmatpush1.msra.mxu0 0.0
    %426 = vmatprep.subr.mxu0 0.0
    %427 = vmatpush1.msra.mxu0 0.0
    %428 = vmatprep.subr.mxu0 0.0
    %429 = vmatpush1.msra.mxu0 0.0
    %430 = vmatprep.subr.mxu0 0.0
    %431 = vmatpush1.msra.mxu0 0.0
    %432 = vmatprep.mubr.f32.mxu0 0.0
    %433 = vmatmul.mubr.f32.gmra.mrb[0].mxu0 %v366
    %v434 = vpop.f32.mrb[0].mxu0
    %v435 = vadd.f32 0.0, %v434
    %v436 = vpop.f32.mrb[0].mxu0
    %437 = vdwg.mxu0
    %v438 = vld [vmem:[#allocation2 + $0x80] sm:$0xff]
    %v439 = vld [vmem:[#allocation2 + $0x88] sm:$0xff]
    %v440 = vld [vmem:[#allocation2 + $0x90] sm:$0xff]
    %v441 = vld [vmem:[#allocation2 + $0x98] sm:$0xff]
    %442 = vmatprep.subr.mxu0 0.0
    %443 = vmatpush1.msra.mxu0 %v438
    %444 = vmatprep.subr.mxu0 0.0
    %445 = vmatpush1.msra.mxu0 %v439
    %446 = vmatprep.subr.mxu0 0.0
    %447 = vmatpush1.msra.mxu0 %v440
    %448 = vmatprep.subr.mxu0 0.0
    %449 = vmatpush1.msra.mxu0 %v441
    %450 = vmatprep.subr.mxu0 0.0
    %451 = vmatpush1.msra.mxu0 0.0
    %452 = vmatprep.subr.mxu0 0.0
    %453 = vmatpush1.msra.mxu0 0.0
    %454 = vmatprep.subr.mxu0 0.0
    %455 = vmatpush1.msra.mxu0 0.0
    %456 = vmatprep.subr.mxu0 0.0
    %457 = vmatpush1.msra.mxu0 0.0
    %458 = vmatprep.subr.mxu0 0.0
    %459 = vmatpush1.msra.mxu0 0.0
    %460 = vmatprep.subr.mxu0 0.0
    %461 = vmatpush1.msra.mxu0 0.0
    %462 = vmatprep.subr.mxu0 0.0
    %463 = vmatpush1.msra.mxu0 0.0
    %464 = vmatprep.subr.mxu0 0.0
    %465 = vmatpush1.msra.mxu0 0.0
    %466 = vmatprep.subr.mxu0 0.0
    %467 = vmatpush1.msra.mxu0 0.0
    %468 = vmatprep.subr.mxu0 0.0
    %469 = vmatpush1.msra.mxu0 0.0
    %470 = vmatprep.subr.mxu0 0.0
    %471 = vmatpush1.msra.mxu0 0.0
    %472 = vmatprep.subr.mxu0 0.0
    %473 = vmatpush1.msra.mxu0 0.0
    %474 = vmatprep.subr.mxu0 0.0
    %475 = vmatpush1.msra.mxu0 0.0
    %476 = vmatprep.subr.mxu0 0.0
    %477 = vmatpush1.msra.mxu0 0.0
    %478 = vmatprep.subr.mxu0 0.0
    %479 = vmatpush1.msra.mxu0 0.0
    %480 = vmatprep.subr.mxu0 0.0
    %481 = vmatpush1.msra.mxu0 0.0
    %482 = vmatprep.subr.mxu0 0.0
    %483 = vmatpush1.msra.mxu0 0.0
    %484 = vmatprep.subr.mxu0 0.0
    %485 = vmatpush1.msra.mxu0 0.0
    %486 = vmatprep.subr.mxu0 0.0
    %487 = vmatpush1.msra.mxu0 0.0
    %488 = vmatprep.subr.mxu0 0.0
    %489 = vmatpush1.msra.mxu0 0.0
    %490 = vmatprep.subr.mxu0 0.0
    %491 = vmatpush1.msra.mxu0 0.0
    %492 = vmatprep.subr.mxu0 0.0
    %493 = vmatpush1.msra.mxu0 0.0
    %494 = vmatprep.subr.mxu0 0.0
    %495 = vmatpush1.msra.mxu0 0.0
    %496 = vmatprep.subr.mxu0 0.0
    %497 = vmatpush1.msra.mxu0 0.0
    %498 = vmatprep.subr.mxu0 0.0
    %499 = vmatpush1.msra.mxu0 0.0
    %500 = vmatprep.subr.mxu0 0.0
    %501 = vmatpush1.msra.mxu0 0.0
    %502 = vmatprep.subr.mxu0 0.0
    %503 = vmatpush1.msra.mxu0 0.0
    %504 = vmatprep.subr.mxu0 0.0
    %505 = vmatpush1.msra.mxu0 0.0
    %506 = vmatprep.mubr.f32.mxu0 0.0
    %507 = vmatmul.mubr.f32.gmra.mrb[0].mxu0 %v366
    %v508 = vpop.f32.mrb[0].mxu0
    %v509 = vadd.f32 0.0, %v508
    %v510 = vpop.f32.mrb[0].mxu0
    %511 = vdwg.mxu0
    %v513 = vsel %vm155, %v509, 0
    %v516 = vsel %vm155, %v347, 0
    %v519 = vsel %vm155, %v352, 0
    %v522 = vsel %vm155, %v357, 0
    %v525 = vsel %vm155, %v362, 0
    %527 = vmatprep.subr.mxu0 0.0
    %528 = vmatpush1.xpose.msra.mxu0 %v516
    %529 = vmatprep.subr.mxu0 0.0
    %530 = vmatpush1.xpose.msra.mxu0 %v519
    %531 = vmatprep.subr.mxu0 0.0
    %532 = vmatpush1.xpose.msra.mxu0 %v522
    %533 = vmatprep.subr.mxu0 0.0
    %534 = vmatpush1.xpose.msra.mxu0 %v525
    %535 = vmatprep.subr.mxu0 0.0
    %536 = vmatpush1.xpose.msra.mxu0 0.0
    %537 = vmatprep.subr.mxu0 0.0
    %538 = vmatpush1.xpose.msra.mxu0 0.0
    %539 = vmatprep.subr.mxu0 0.0
    %540 = vmatpush1.xpose.msra.mxu0 0.0
    %541 = vmatprep.subr.mxu0 0.0
    %542 = vmatpush1.xpose.msra.mxu0 0.0
    %543 = vmatprep.subr.mxu0 0.0
    %544 = vmatpush1.xpose.msra.mxu0 0.0
    %545 = vmatprep.subr.mxu0 0.0
    %546 = vmatpush1.xpose.msra.mxu0 0.0
    %547 = vmatprep.subr.mxu0 0.0
    %548 = vmatpush1.xpose.msra.mxu0 0.0
    %549 = vmatprep.subr.mxu0 0.0
    %550 = vmatpush1.xpose.msra.mxu0 0.0
    %551 = vmatprep.subr.mxu0 0.0
    %552 = vmatpush1.xpose.msra.mxu0 0.0
    %553 = vmatprep.subr.mxu0 0.0
    %554 = vmatpush1.xpose.msra.mxu0 0.0
    %555 = vmatprep.subr.mxu0 0.0
    %556 = vmatpush1.xpose.msra.mxu0 0.0
    %557 = vmatprep.subr.mxu0 0.0
    %558 = vmatpush1.xpose.msra.mxu0 0.0
    %559 = vmatprep.subr.mxu0 0.0
    %560 = vmatpush1.xpose.msra.mxu0 0.0
    %561 = vmatprep.subr.mxu0 0.0
    %562 = vmatpush1.xpose.msra.mxu0 0.0
    %563 = vmatprep.subr.mxu0 0.0
    %564 = vmatpush1.xpose.msra.mxu0 0.0
    %565 = vmatprep.subr.mxu0 0.0
    %566 = vmatpush1.xpose.msra.mxu0 0.0
    %567 = vmatprep.subr.mxu0 0.0
    %568 = vmatpush1.xpose.msra.mxu0 0.0
    %569 = vmatprep.subr.mxu0 0.0
    %570 = vmatpush1.xpose.msra.mxu0 0.0
    %571 = vmatprep.subr.mxu0 0.0
    %572 = vmatpush1.xpose.msra.mxu0 0.0
    %573 = vmatprep.subr.mxu0 0.0
    %574 = vmatpush1.xpose.msra.mxu0 0.0
    %575 = vmatprep.subr.mxu0 0.0
    %576 = vmatpush1.xpose.msra.mxu0 0.0
    %577 = vmatprep.subr.mxu0 0.0
    %578 = vmatpush1.xpose.msra.mxu0 0.0
    %579 = vmatprep.subr.mxu0 0.0
    %580 = vmatpush1.xpose.msra.mxu0 0.0
    %581 = vmatprep.subr.mxu0 0.0
    %582 = vmatpush1.xpose.msra.mxu0 0.0
    %583 = vmatprep.subr.mxu0 0.0
    %584 = vmatpush1.xpose.msra.mxu0 0.0
    %585 = vmatprep.subr.mxu0 0.0
    %586 = vmatpush1.xpose.msra.mxu0 0.0
    %587 = vmatprep.subr.mxu0 0.0
    %588 = vmatpush1.xpose.msra.mxu0 0.0
    %589 = vmatprep.subr.mxu0 0.0
    %590 = vmatpush1.xpose.msra.mxu0 0.0
    %591 = vmatprep.mubr.f32.mxu0 0.0
    %592 = vmatmul.mubr.f32.gmra.mrb[0].mxu0 %v513
    %v593 = vpop.f32.mrb[0].mxu0
    %v594 = vadd.f32 0.0, %v593
    %v595 = vpop.f32.mrb[0].mxu0
    %596 = vdwg.mxu0
    %v597 = vmul.f32 %v594, 0.17677669
    %v598 = vmul.f32 %v509, %v435
    %vm599 = vcmask 253952
    %v600 = vsel %vm599, %v598, 0.0
    %601 = vadd.xlane.f32.xlu0 %v600
    %v602 = vpop.xlane.xlu0 %601
    %v603 = vmul.f32 %v602, 0.17677669
    %v604 = vlaneseq
    %v605 = vshrl.u32 %v604, 7
    %v606 = vsub.s32 0, %v605
    %v607 = vrot.slane %v597, %v606
    %v608 = vlaneseq
    %v609 = vand.u32 %v608, 127
    %v610 = vlaneseq
    %v611 = vshrl.u32 %v610, 7
    %v612 = vmul.u32 %v611, 15
    %vm613 = vcmp.ge.s32.totalorder %v609, %v612
    %v614 = vadd.s32 %v611, 1
    %v615 = vmul.u32 %v614, 15
    %vm616 = vcmp.lt.s32.totalorder %v609, %v615
    %vm617 = vmand %vm613, %vm616
    %v618 = vsel %vm617, %v607, -1e+30
    %v619 = vlaneseq
    %v620 = vshrl.u32 %v619, 7
    %v621 = vsub.s32 0, %v620
    %v622 = vrot.slane %v603, %v621
    %vm623 = vcmask 238592
    %v624 = vsel %vm623, %v618, -inf
    %625 = vmax.xlane.f32.xlu0 %v624
    %v626 = vpop.xlane.xlu0 %625
    %v627 = vmax.f32 %v626, %v622
    %v628 = vsub.f32 %v618, %v627
    %v629 = vmul.f32 %v628, 1.442695
    %v630 = vpow.pop %v629
    %v631 = vsub.f32 %v622, %v627
    %v632 = vmul.f32 %v631, 1.442695
    %v633 = vpow.pop %v632
    %v634 = vsel %vm623, %v630, 0.0
    %635 = vadd.xlane.f32.xlu0 %v634
    %v636 = vpop.xlane.xlu0 %635
    %v637 = vadd.f32 %v636, %v633
    %v638 = vrcp.pop %v637
    %v639 = vlaneseq
    %v640 = vshrl.u32 %v639, 7
    %v641 = vsub.s32 0, %v640
    %v642 = vrot.slane %v435, %v641
    %v643 = vmul.f32 %v633, %v642
    %644 = vrot.lane.b32.xlu0 %v347, 96
    %v645 = vpop.permute.xlu0 %644
    %646 = vrot.lane.b32.xlu0 %v352, 96
    %v647 = vpop.permute.xlu0 %646
    %648 = vrot.lane.b32.xlu0 %v357, 96
    %v649 = vpop.permute.xlu0 %648
    %650 = vrot.lane.b32.xlu0 %v362, 96
    %v651 = vpop.permute.xlu0 %650
    %656 = vrot.lane.b32.xlu0 %v643, 96
    %v657 = vpop.permute.xlu0 %656
    %vm659 = vcmask 244736
    %v661 = vsel %vm659, %v630, 0
    %vm663 = vcmask 1045504
    %v664 = vsel %vm663, %v651, 0
    %666 = vmatprep.subr.mxu0 0.0
    %667 = vmatpush1.msra.mxu0 %v645
    %668 = vmatprep.subr.mxu0 0.0
    %669 = vmatpush1.msra.mxu0 %v647
    %670 = vmatprep.subr.mxu0 0.0
    %671 = vmatpush1.msra.mxu0 %v649
    %672 = vmatprep.subr.mxu0 0.0
    %673 = vmatpush1.msra.mxu0 %v664
    %674 = vmatprep.subr.mxu0 0.0
    %675 = vmatpush1.msra.mxu0 0.0
    %676 = vmatprep.subr.mxu0 0.0
    %677 = vmatpush1.msra.mxu0 0.0
    %678 = vmatprep.subr.mxu0 0.0
    %679 = vmatpush1.msra.mxu0 0.0
    %680 = vmatprep.subr.mxu0 0.0
    %681 = vmatpush1.msra.mxu0 0.0
    %682 = vmatprep.subr.mxu0 0.0
    %683 = vmatpush1.msra.mxu0 0.0
    %684 = vmatprep.subr.mxu0 0.0
    %685 = vmatpush1.msra.mxu0 0.0
    %686 = vmatprep.subr.mxu0 0.0
    %687 = vmatpush1.msra.mxu0 0.0
    %688 = vmatprep.subr.mxu0 0.0
    %689 = vmatpush1.msra.mxu0 0.0
    %690 = vmatprep.subr.mxu0 0.0
    %691 = vmatpush1.msra.mxu0 0.0
    %692 = vmatprep.subr.mxu0 0.0
    %693 = vmatpush1.msra.mxu0 0.0
    %694 = vmatprep.subr.mxu0 0.0
    %695 = vmatpush1.msra.mxu0 0.0
    %696 = vmatprep.subr.mxu0 0.0
    %697 = vmatpush1.msra.mxu0 0.0
    %698 = vmatprep.subr.mxu0 0.0
    %699 = vmatpush1.msra.mxu0 0.0
    %700 = vmatprep.subr.mxu0 0.0
    %701 = vmatpush1.msra.mxu0 0.0
    %702 = vmatprep.subr.mxu0 0.0
    %703 = vmatpush1.msra.mxu0 0.0
    %704 = vmatprep.subr.mxu0 0.0
    %705 = vmatpush1.msra.mxu0 0.0
    %706 = vmatprep.subr.mxu0 0.0
    %707 = vmatpush1.msra.mxu0 0.0
    %708 = vmatprep.subr.mxu0 0.0
    %709 = vmatpush1.msra.mxu0 0.0
    %710 = vmatprep.subr.mxu0 0.0
    %711 = vmatpush1.msra.mxu0 0.0
    %712 = vmatprep.subr.mxu0 0.0
    %713 = vmatpush1.msra.mxu0 0.0
    %714 = vmatprep.subr.mxu0 0.0
    %715 = vmatpush1.msra.mxu0 0.0
    %716 = vmatprep.subr.mxu0 0.0
    %717 = vmatpush1.msra.mxu0 0.0
    %718 = vmatprep.subr.mxu0 0.0
    %719 = vmatpush1.msra.mxu0 0.0
    %720 = vmatprep.subr.mxu0 0.0
    %721 = vmatpush1.msra.mxu0 0.0
    %722 = vmatprep.subr.mxu0 0.0
    %723 = vmatpush1.msra.mxu0 0.0
    %724 = vmatprep.subr.mxu0 0.0
    %725 = vmatpush1.msra.mxu0 0.0
    %726 = vmatprep.subr.mxu0 0.0
    %727 = vmatpush1.msra.mxu0 0.0
    %728 = vmatprep.subr.mxu0 0.0
    %729 = vmatpush1.msra.mxu0 0.0
    %730 = vmatprep.mubr.f32.mxu0 0.0
    %731 = vmatmul.mubr.f32.gmra.mrb[0].mxu0 %v661
    %v732 = vpop.f32.mrb[0].mxu0
    %v733 = vadd.f32 %v657, %v732
    %v734 = vpop.f32.mrb[0].mxu0
    %735 = vdwg.mxu0
    %v736 = vmul.f32 %v733, %v638
    %v737 = vld [vmem:[#allocation2 + $0xa0] sm:$0xff]
    %v738 = vld [vmem:[#allocation2 + $0xa8] sm:$0xff]
    %v739 = vld [vmem:[#allocation2 + $0xb0] sm:$0xff]
    %v740 = vld [vmem:[#allocation2 + $0xb8] sm:$0xff]
    %v741 = vld [vmem:[%s2 + $0x1] sm:$0x1]
    %v742 = vlaneseq
    %v743 = vshrl.u32 %v742, 7
    %v744 = vsub.s32 0, %v743
    %v745 = vrot.slane %v741, %v744
    %v747 = vsel %vm155, %v736, 0
    %749 = vmatprep.subr.mxu0 0.0
    %750 = vmatpush1.msra.mxu0 %v737
    %751 = vmatprep.subr.mxu0 0.0
    %752 = vmatpush1.msra.mxu0 %v738
    %753 = vmatprep.subr.mxu0 0.0
    %754 = vmatpush1.msra.mxu0 %v739
    %755 = vmatprep.subr.mxu0 0.0
    %756 = vmatpush1.msra.mxu0 %v740
    %757 = vmatprep.subr.mxu0 0.0
    %758 = vmatpush1.msra.mxu0 0.0
    %759 = vmatprep.subr.mxu0 0.0
    %760 = vmatpush1.msra.mxu0 0.0
    %761 = vmatprep.subr.mxu0 0.0
    %762 = vmatpush1.msra.mxu0 0.0
    %763 = vmatprep.subr.mxu0 0.0
    %764 = vmatpush1.msra.mxu0 0.0
    %765 = vmatprep.subr.mxu0 0.0
    %766 = vmatpush1.msra.mxu0 0.0
    %767 = vmatprep.subr.mxu0 0.0
    %768 = vmatpush1.msra.mxu0 0.0
    %769 = vmatprep.subr.mxu0 0.0
    %770 = vmatpush1.msra.mxu0 0.0
    %771 = vmatprep.subr.mxu0 0.0
    %772 = vmatpush1.msra.mxu0 0.0
    %773 = vmatprep.subr.mxu0 0.0
    %774 = vmatpush1.msra.mxu0 0.0
    %775 = vmatprep.subr.mxu0 0.0
    %776 = vmatpush1.msra.mxu0 0.0
    %777 = vmatprep.subr.mxu0 0.0
    %778 = vmatpush1.msra.mxu0 0.0
    %779 = vmatprep.subr.mxu0 0.0
    %780 = vmatpush1.msra.mxu0 0.0
    %781 = vmatprep.subr.mxu0 0.0
    %782 = vmatpush1.msra.mxu0 0.0
    %783 = vmatprep.subr.mxu0 0.0
    %784 = vmatpush1.msra.mxu0 0.0
    %785 = vmatprep.subr.mxu0 0.0
    %786 = vmatpush1.msra.mxu0 0.0
    %787 = vmatprep.subr.mxu0 0.0
    %788 = vmatpush1.msra.mxu0 0.0
    %789 = vmatprep.subr.mxu0 0.0
    %790 = vmatpush1.msra.mxu0 0.0
    %791 = vmatprep.subr.mxu0 0.0
    %792 = vmatpush1.msra.mxu0 0.0
    %793 = vmatprep.subr.mxu0 0.0
    %794 = vmatpush1.msra.mxu0 0.0
    %795 = vmatprep.subr.mxu0 0.0
    %796 = vmatpush1.msra.mxu0 0.0
    %797 = vmatprep.subr.mxu0 0.0
    %798 = vmatpush1.msra.mxu0 0.0
    %799 = vmatprep.subr.mxu0 0.0
    %800 = vmatpush1.msra.mxu0 0.0
    %801 = vmatprep.subr.mxu0 0.0
    %802 = vmatpush1.msra.mxu0 0.0
    %803 = vmatprep.subr.mxu0 0.0
    %804 = vmatpush1.msra.mxu0 0.0
    %805 = vmatprep.subr.mxu0 0.0
    %806 = vmatpush1.msra.mxu0 0.0
    %807 = vmatprep.subr.mxu0 0.0
    %808 = vmatpush1.msra.mxu0 0.0
    %809 = vmatprep.subr.mxu0 0.0
    %810 = vmatpush1.msra.mxu0 0.0
    %811 = vmatprep.subr.mxu0 0.0
    %812 = vmatpush1.msra.mxu0 0.0
    %813 = vmatprep.mubr.f32.mxu0 0.0
    %814 = vmatmul.mubr.f32.gmra.mrb[0].mxu0 %v747
    %v815 = vpop.f32.mrb[0].mxu0
    %v816 = vadd.f32 %v745, %v815
    %v817 = vpop.f32.mrb[0].mxu0
    %818 = vdwg.mxu0
    %v819 = vlaneseq
    %v820 = vshrl.u32 %v819, 7
    %v821 = vsub.s32 0, %v820
    %v822 = vrot.slane %v263, %v821
    %v823 = vadd.f32 %v822, %v816
    %v824 = vld [vmem:[%s2 + $0x2] sm:$0x1]
    %v825 = vld [vmem:[%s2 + $0x3] sm:$0x1]
    %vm826 = vcmask 254976
    %v827 = vsel %vm826, %v823, 0.0
    %828 = vadd.xlane.f32.xlu0 %v827
    %v829 = vpop.xlane.xlu0 %828
    %v830 = vrcp.pop 32.0
    %v831 = vmul.f32 %v829, %v830
    %v832 = vsub.f32 %v823, %v831
    %v833 = vmul.f32 %v832, %v832
    %v834 = vsel %vm826, %v833, 0.0
    %835 = vadd.xlane.f32.xlu0 %v834
    %v836 = vpop.xlane.xlu0 %835
    %v837 = vmul.f32 %v836, %v830
    %v838 = vadd.f32 %v837, 1e-05
    %v839 = vrsqrt.pop %v838
    %v840 = vmul.f32 %v832, %v839
    %v841 = vlaneseq
    %v842 = vshrl.u32 %v841, 7
    %v843 = vsub.s32 0, %v842
    %v844 = vrot.slane %v824, %v843
    %v845 = vmul.f32 %v840, %v844
    %v846 = vlaneseq
    %v847 = vshrl.u32 %v846, 7
    %v848 = vsub.s32 0, %v847
    %v849 = vrot.slane %v825, %v848
    %v850 = vadd.f32 %v845, %v849
    %v851 = vld [vmem:[#allocation2 + $0xc0] sm:$0xff]
    %v852 = vld [vmem:[#allocation2 + $0xc8] sm:$0xff]
    %v853 = vld [vmem:[#allocation2 + $0xd0] sm:$0xff]
    %v854 = vld [vmem:[#allocation2 + $0xd8] sm:$0xff]
    %v855 = vld [vmem:[#allocation2 + $0xe0] sm:$0xff]
    %v856 = vld [vmem:[#allocation2 + $0xe8] sm:$0xff]
    %v857 = vld [vmem:[#allocation2 + $0xf0] sm:$0xff]
    %v858 = vld [vmem:[#allocation2 + $0xf8] sm:$0xff]
    %v859 = vld [vmem:[#allocation2 + $0x100] sm:$0xff]
    %v860 = vld [vmem:[#allocation2 + $0x108] sm:$0xff]
    %v861 = vld [vmem:[#allocation2 + $0x110] sm:$0xff]
    %v862 = vld [vmem:[#allocation2 + $0x118] sm:$0xff]
    %v863 = vld [vmem:[%s2 + $0x4] sm:$0x1]
    %v864 = vlaneseq
    %v865 = vshrl.u32 %v864, 7
    %v866 = vsub.s32 0, %v865
    %v867 = vrot.slane %v863, %v866
    %v869 = vsel %vm155, %v850, 0
    %871 = vmatprep.subr.mxu0 0.0
    %872 = vmatpush1.msra.mxu0 %v851
    %873 = vmatprep.subr.mxu0 0.0
    %874 = vmatpush1.msra.mxu0 %v852
    %875 = vmatprep.subr.mxu0 0.0
    %876 = vmatpush1.msra.mxu0 %v853
    %877 = vmatprep.subr.mxu0 0.0
    %878 = vmatpush1.msra.mxu0 %v854
    %879 = vmatprep.subr.mxu0 0.0
    %880 = vmatpush1.msra.mxu0 0.0
    %881 = vmatprep.subr.mxu0 0.0
    %882 = vmatpush1.msra.mxu0 0.0
    %883 = vmatprep.subr.mxu0 0.0
    %884 = vmatpush1.msra.mxu0 0.0
    %885 = vmatprep.subr.mxu0 0.0
    %886 = vmatpush1.msra.mxu0 0.0
    %887 = vmatprep.subr.mxu0 0.0
    %888 = vmatpush1.msra.mxu0 0.0
    %889 = vmatprep.subr.mxu0 0.0
    %890 = vmatpush1.msra.mxu0 0.0
    %891 = vmatprep.subr.mxu0 0.0
    %892 = vmatpush1.msra.mxu0 0.0
    %893 = vmatprep.subr.mxu0 0.0
    %894 = vmatpush1.msra.mxu0 0.0
    %895 = vmatprep.subr.mxu0 0.0
    %896 = vmatpush1.msra.mxu0 0.0
    %897 = vmatprep.subr.mxu0 0.0
    %898 = vmatpush1.msra.mxu0 0.0
    %899 = vmatprep.subr.mxu0 0.0
    %900 = vmatpush1.msra.mxu0 0.0
    %901 = vmatprep.subr.mxu0 0.0
    %902 = vmatpush1.msra.mxu0 0.0
    %903 = vmatprep.subr.mxu0 0.0
    %904 = vmatpush1.msra.mxu0 0.0
    %905 = vmatprep.subr.mxu0 0.0
    %906 = vmatpush1.msra.mxu0 0.0
    %907 = vmatprep.subr.mxu0 0.0
    %908 = vmatpush1.msra.mxu0 0.0
    %909 = vmatprep.subr.mxu0 0.0
    %910 = vmatpush1.msra.mxu0 0.0
    %911 = vmatprep.subr.mxu0 0.0
    %912 = vmatpush1.msra.mxu0 0.0
    %913 = vmatprep.subr.mxu0 0.0
    %914 = vmatpush1.msra.mxu0 0.0
    %915 = vmatprep.subr.mxu0 0.0
    %916 = vmatpush1.msra.mxu0 0.0
    %917 = vmatprep.subr.mxu0 0.0
    %918 = vmatpush1.msra.mxu0 0.0
    %919 = vmatprep.subr.mxu0 0.0
    %920 = vmatpush1.msra.mxu0 0.0
    %921 = vmatprep.subr.mxu0 0.0
    %922 = vmatpush1.msra.mxu0 0.0
    %923 = vmatprep.subr.mxu0 0.0
    %924 = vmatpush1.msra.mxu0 0.0
    %925 = vmatprep.subr.mxu0 0.0
    %926 = vmatpush1.msra.mxu0 0.0
    %927 = vmatprep.subr.mxu0 0.0
    %928 = vmatpush1.msra.mxu0 0.0
    %929 = vmatprep.subr.mxu0 0.0
    %930 = vmatpush1.msra.mxu0 0.0
    %931 = vmatprep.subr.mxu0 0.0
    %932 = vmatpush1.msra.mxu0 0.0
    %933 = vmatprep.subr.mxu0 0.0
    %934 = vmatpush1.msra.mxu0 0.0
    %935 = vmatprep.mubr.f32.mxu0 0.0
    %936 = vmatmul.mubr.f32.gmra.mrb[0].mxu0 %v869
    %v937 = vpop.f32.mrb[0].mxu0
    %v938 = vadd.f32 %v867, %v937
    %v939 = vpop.f32.mrb[0].mxu0
    %940 = vdwg.mxu0
    %v941 = vmul.f32 %v938, %v938
    %v942 = vmul.f32 %v938, %v941
    %v943 = vmul.f32 %v942, 0.044715
    %v944 = vadd.f32 %v938, %v943
    %v945 = vmul.f32 %v944, 0.7978846
    %v946 = vtanh.pop %v945
    %v947 = vadd.f32 %v946, 1.0
    %v948 = vmul.f32 %v947, 0.5
    %v949 = vmul.f32 %v938, %v948
    %v950 = vld [vmem:[%s2 + $0x5] sm:$0x1]
    %v951 = vlaneseq
    %v952 = vshrl.u32 %v951, 7
    %v953 = vsub.s32 0, %v952
    %v954 = vrot.slane %v950, %v953
    %v956 = vsel %vm40, %v949, 0
    %958 = vmatprep.subr.mxu0 0.0
    %959 = vmatpush1.msra.mxu0 %v855
    %960 = vmatprep.subr.mxu0 0.0
    %961 = vmatpush1.msra.mxu0 %v856
    %962 = vmatprep.subr.mxu0 0.0
    %963 = vmatpush1.msra.mxu0 %v857
    %964 = vmatprep.subr.mxu0 0.0
    %965 = vmatpush1.msra.mxu0 %v858
    %966 = vmatprep.subr.mxu0 0.0
    %967 = vmatpush1.msra.mxu0 %v859
    %968 = vmatprep.subr.mxu0 0.0
    %969 = vmatpush1.msra.mxu0 %v860
    %970 = vmatprep.subr.mxu0 0.0
    %971 = vmatpush1.msra.mxu0 %v861
    %972 = vmatprep.subr.mxu0 0.0
    %973 = vmatpush1.msra.mxu0 %v862
    %974 = vmatprep.subr.mxu0 0.0
    %975 = vmatpush1.msra.mxu0 0.0
    %976 = vmatprep.subr.mxu0 0.0
    %977 = vmatpush1.msra.mxu0 0.0
    %978 = vmatprep.subr.mxu0 0.0
    %979 = vmatpush1.msra.mxu0 0.0
    %980 = vmatprep.subr.mxu0 0.0
    %981 = vmatpush1.msra.mxu0 0.0
    %982 = vmatprep.subr.mxu0 0.0
    %983 = vmatpush1.msra.mxu0 0.0
    %984 = vmatprep.subr.mxu0 0.0
    %985 = vmatpush1.msra.mxu0 0.0
    %986 = vmatprep.subr.mxu0 0.0
    %987 = vmatpush1.msra.mxu0 0.0
    %988 = vmatprep.subr.mxu0 0.0
    %989 = vmatpush1.msra.mxu0 0.0
    %990 = vmatprep.subr.mxu0 0.0
    %991 = vmatpush1.msra.mxu0 0.0
    %992 = vmatprep.subr.mxu0 0.0
    %993 = vmatpush1.msra.mxu0 0.0
    %994 = vmatprep.subr.mxu0 0.0
    %995 = vmatpush1.msra.mxu0 0.0
    %996 = vmatprep.subr.mxu0 0.0
    %997 = vmatpush1.msra.mxu0 0.0
    %998 = vmatprep.subr.mxu0 0.0
    %999 = vmatpush1.msra.mxu0 0.0
    %1000 = vmatprep.subr.mxu0 0.0
    %1001 = vmatpush1.msra.mxu0 0.0
    %1002 = vmatprep.subr.mxu0 0.0
    %1003 = vmatpush1.msra.mxu0 0.0
    %1004 = vmatprep.subr.mxu0 0.0
    %1005 = vmatpush1.msra.mxu0 0.0
    %1006 = vmatprep.subr.mxu0 0.0
    %1007 = vmatpush1.msra.mxu0 0.0
    %1008 = vmatprep.subr.mxu0 0.0
    %1009 = vmatpush1.msra.mxu0 0.0
    %1010 = vmatprep.subr.mxu0 0.0
    %1011 = vmatpush1.msra.mxu0 0.0
    %1012 = vmatprep.subr.mxu0 0.0
    %1013 = vmatpush1.msra.mxu0 0.0
    %1014 = vmatprep.subr.mxu0 0.0
    %1015 = vmatpush1.msra.mxu0 0.0
    %1016 = vmatprep.subr.mxu0 0.0
    %1017 = vmatpush1.msra.mxu0 0.0
    %1018 = vmatprep.subr.mxu0 0.0
    %1019 = vmatpush1.msra.mxu0 0.0
    %1020 = vmatprep.subr.mxu0 0.0
    %1021 = vmatpush1.msra.mxu0 0.0
    %1022 = vmatprep.mubr.f32.mxu0 0.0
    %1023 = vmatmul.mubr.f32.gmra.mrb[0].mxu0 %v956
    %v1024 = vpop.f32.mrb[0].mxu0
    %v1025 = vadd.f32 %v954, %v1024
    %v1026 = vpop.f32.mrb[0].mxu0
    %1027 = vdwg.mxu0
    %v1028 = vadd.f32 %v850, %v1025
    %v1029 = vld [vmem:[%s2 + $0x6] sm:$0x1]
    %v1030 = vld [vmem:[%s2 + $0x7] sm:$0x1]
    %v1031 = vsel %vm826, %v1028, 0.0
    %1032 = vadd.xlane.f32.xlu0 %v1031
    %v1033 = vpop.xlane.xlu0 %1032
    %v1034 = vmul.f32 %v1033, %v830
    %v1035 = vsub.f32 %v1028, %v1034
    %v1036 = vmul.f32 %v1035, %v1035
    %v1037 = vsel %vm826, %v1036, 0.0
    %1038 = vadd.xlane.f32.xlu0 %v1037
    %v1039 = vpop.xlane.xlu0 %1038
    %v1040 = vmul.f32 %v1039, %v830
    %v1041 = vadd.f32 %v1040, 1e-05
    %v1042 = vrsqrt.pop %v1041
    %v1043 = vmul.f32 %v1035, %v1042
    %v1044 = vlaneseq
    %v1045 = vshrl.u32 %v1044, 7
    %v1046 = vsub.s32 0, %v1045
    %v1047 = vrot.slane %v1029, %v1046
    %v1048 = vmul.f32 %v1043, %v1047
    %v1049 = vlaneseq
    %v1050 = vshrl.u32 %v1049, 7
    %v1051 = vsub.s32 0, %v1050
    %v1052 = vrot.slane %v1030, %v1051
    %v1053 = vadd.f32 %v1048, %v1052
    %v1054 = vld [vmem:[#allocation2 + $0x120] sm:$0xff]
    %v1055 = vld [vmem:[#allocation2 + $0x128] sm:$0xff]
    %v1056 = vld [vmem:[#allocation2 + $0x130] sm:$0xff]
    %v1057 = vld [vmem:[#allocation2 + $0x138] sm:$0xff]
    %v1058 = vld [vmem:[#allocation2 + $0x140] sm:$0xff]
    %v1059 = vld [vmem:[#allocation2 + $0x148] sm:$0xff]
    %v1060 = vld [vmem:[#allocation2 + $0x150] sm:$0xff]
    %v1061 = vld [vmem:[#allocation2 + $0x158] sm:$0xff]
    %v1062 = vld [vmem:[#allocation2 + $0x160] sm:$0xff]
    %v1063 = vld [vmem:[#allocation2 + $0x168] sm:$0xff]
    %v1064 = vld [vmem:[#allocation2 + $0x170] sm:$0xff]
    %v1065 = vld [vmem:[#allocation2 + $0x178] sm:$0xff]
    %v1066 = vld [vmem:[#allocation2 + $0x180] sm:$0xff]
    %v1067 = vld [vmem:[#allocation2 + $0x188] sm:$0xff]
    %v1068 = vld [vmem:[#allocation2 + $0x190] sm:$0xff]
    %v1069 = vld [vmem:[#allocation2 + $0x198] sm:$0xff]
    %v1070 = vld [vmem:[#allocation2 + $0x1a0] sm:$0xff]
    %v1071 = vld [vmem:[#allocation2 + $0x1a8] sm:$0xff]
    %v1072 = vld [vmem:[#allocation2 + $0x1b0] sm:$0xff]
    %v1073 = vld [vmem:[#allocation2 + $0x1b8] sm:$0xff]
    %v1074 = vld [vmem:[%s2 + $0x8] sm:$0x1]
    %v1075 = vlaneseq
    %v1076 = vshrl.u32 %v1075, 7
    %v1077 = vsub.s32 0, %v1076
    %v1078 = vrot.slane %v1074, %v1077
    %v1080 = vsel %vm155, %v1053, 0
    %1082 = vmatprep.subr.mxu0 0.0
    %1083 = vmatpush1.msra.mxu0 %v1054
    %1084 = vmatprep.subr.mxu0 0.0
    %1085 = vmatpush1.msra.mxu0 %v1055
    %1086 = vmatprep.subr.mxu0 0.0
    %1087 = vmatpush1.msra.mxu0 %v1056
    %1088 = vmatprep.subr.mxu0 0.0
    %1089 = vmatpush1.msra.mxu0 %v1057
    %1090 = vmatprep.subr.mxu0 0.0
    %1091 = vmatpush1.msra.mxu0 0.0
    %1092 = vmatprep.subr.mxu0 0.0
    %1093 = vmatpush1.msra.mxu0 0.0
    %1094 = vmatprep.subr.mxu0 0.0
    %1095 = vmatpush1.msra.mxu0 0.0
    %1096 = vmatprep.subr.mxu0 0.0
    %1097 = vmatpush1.msra.mxu0 0.0
    %1098 = vmatprep.subr.mxu0 0.0
    %1099 = vmatpush1.msra.mxu0 0.0
    %1100 = vmatprep.subr.mxu0 0.0
    %1101 = vmatpush1.msra.mxu0 0.0
    %1102 = vmatprep.subr.mxu0 0.0
    %1103 = vmatpush1.msra.mxu0 0.0
    %1104 = vmatprep.subr.mxu0 0.0
    %1105 = vmatpush1.msra.mxu0 0.0
    %1106 = vmatprep.subr.mxu0 0.0
    %1107 = vmatpush1.msra.mxu0 0.0
    %1108 = vmatprep.subr.mxu0 0.0
    %1109 = vmatpush1.msra.mxu0 0.0
    %1110 = vmatprep.subr.mxu0 0.0
    %1111 = vmatpush1.msra.mxu0 0.0
    %1112 = vmatprep.subr.mxu0 0.0
    %1113 = vmatpush1.msra.mxu0 0.0
    %1114 = vmatprep.subr.mxu0 0.0
    %1115 = vmatpush1.msra.mxu0 0.0
    %1116 = vmatprep.subr.mxu0 0.0
    %1117 = vmatpush1.msra.mxu0 0.0
    %1118 = vmatprep.subr.mxu0 0.0
    %1119 = vmatpush1.msra.mxu0 0.0
    %1120 = vmatprep.subr.mxu0 0.0
    %1121 = vmatpush1.msra.mxu0 0.0
    %1122 = vmatprep.subr.mxu0 0.0
    %1123 = vmatpush1.msra.mxu0 0.0
    %1124 = vmatprep.subr.mxu0 0.0
    %1125 = vmatpush1.msra.mxu0 0.0
    %1126 = vmatprep.subr.mxu0 0.0
    %1127 = vmatpush1.msra.mxu0 0.0
    %1128 = vmatprep.subr.mxu0 0.0
    %1129 = vmatpush1.msra.mxu0 0.0
    %1130 = vmatprep.subr.mxu0 0.0
    %1131 = vmatpush1.msra.mxu0 0.0
    %1132 = vmatprep.subr.mxu0 0.0
    %1133 = vmatpush1.msra.mxu0 0.0
    %1134 = vmatprep.subr.mxu0 0.0
    %1135 = vmatpush1.msra.mxu0 0.0
    %1136 = vmatprep.subr.mxu0 0.0
    %1137 = vmatpush1.msra.mxu0 0.0
    %1138 = vmatprep.subr.mxu0 0.0
    %1139 = vmatpush1.msra.mxu0 0.0
    %1140 = vmatprep.subr.mxu0 0.0
    %1141 = vmatpush1.msra.mxu0 0.0
    %1142 = vmatprep.subr.mxu0 0.0
    %1143 = vmatpush1.msra.mxu0 0.0
    %1144 = vmatprep.subr.mxu0 0.0
    %1145 = vmatpush1.msra.mxu0 0.0
    %1146 = vmatprep.mubr.f32.mxu0 0.0
    %1147 = vmatmul.mubr.f32.gmra.mrb[0].mxu0 %v1080
    %v1148 = vpop.f32.mrb[0].mxu0
    %v1149 = vadd.f32 %v1078, %v1148
    %v1150 = vpop.f32.mrb[0].mxu0
    %1151 = vdwg.mxu0
    %v1152 = vmax.f32 %v1149, 0.0
    %v1153 = vld [vmem:[%s2 + $0x9] sm:$0x1]
    %v1154 = vlaneseq
    %v1155 = vshrl.u32 %v1154, 7
    %v1156 = vsub.s32 0, %v1155
    %v1157 = vrot.slane %v1153, %v1156
    %1158 = vmatprep.subr.mxu0 0.0
    %1159 = vmatpush1.msra.mxu0 %v1058
    %1160 = vmatprep.subr.mxu0 0.0
    %1161 = vmatpush1.msra.mxu0 %v1059
    %1162 = vmatprep.subr.mxu0 0.0
    %1163 = vmatpush1.msra.mxu0 %v1060
    %1164 = vmatprep.subr.mxu0 0.0
    %1165 = vmatpush1.msra.mxu0 %v1061
    %1166 = vmatprep.subr.mxu0 0.0
    %1167 = vmatpush1.msra.mxu0 %v1062
    %1168 = vmatprep.subr.mxu0 0.0
    %1169 = vmatpush1.msra.mxu0 %v1063
    %1170 = vmatprep.subr.mxu0 0.0
    %1171 = vmatpush1.msra.mxu0 %v1064
    %1172 = vmatprep.subr.mxu0 0.0
    %1173 = vmatpush1.msra.mxu0 %v1065
    %1174 = vmatprep.subr.mxu0 0.0
    %1175 = vmatpush1.msra.mxu0 %v1066
    %1176 = vmatprep.subr.mxu0 0.0
    %1177 = vmatpush1.msra.mxu0 %v1067
    %1178 = vmatprep.subr.mxu0 0.0
    %1179 = vmatpush1.msra.mxu0 %v1068
    %1180 = vmatprep.subr.mxu0 0.0
    %1181 = vmatpush1.msra.mxu0 %v1069
    %1182 = vmatprep.subr.mxu0 0.0
    %1183 = vmatpush1.msra.mxu0 %v1070
    %1184 = vmatprep.subr.mxu0 0.0
    %1185 = vmatpush1.msra.mxu0 %v1071
    %1186 = vmatprep.subr.mxu0 0.0
    %1187 = vmatpush1.msra.mxu0 %v1072
    %1188 = vmatprep.subr.mxu0 0.0
    %1189 = vmatpush1.msra.mxu0 %v1073
    %1190 = vmatprep.subr.mxu0 0.0
    %1191 = vmatpush1.msra.mxu0 0.0
    %1192 = vmatprep.subr.mxu0 0.0
    %1193 = vmatpush1.msra.mxu0 0.0
    %1194 = vmatprep.subr.mxu0 0.0
    %1195 = vmatpush1.msra.mxu0 0.0
    %1196 = vmatprep.subr.mxu0 0.0
    %1197 = vmatpush1.msra.mxu0 0.0
    %1198 = vmatprep.subr.mxu0 0.0
    %1199 = vmatpush1.msra.mxu0 0.0
    %1200 = vmatprep.subr.mxu0 0.0
    %1201 = vmatpush1.msra.mxu0 0.0
    %1202 = vmatprep.subr.mxu0 0.0
    %1203 = vmatpush1.msra.mxu0 0.0
    %1204 = vmatprep.subr.mxu0 0.0
    %1205 = vmatpush1.msra.mxu0 0.0
    %1206 = vmatprep.subr.mxu0 0.0
    %1207 = vmatpush1.msra.mxu0 0.0
    %1208 = vmatprep.subr.mxu0 0.0
    %1209 = vmatpush1.msra.mxu0 0.0
    %1210 = vmatprep.subr.mxu0 0.0
    %1211 = vmatpush1.msra.mxu0 0.0
    %1212 = vmatprep.subr.mxu0 0.0
    %1213 = vmatpush1.msra.mxu0 0.0
    %1214 = vmatprep.subr.mxu0 0.0
    %1215 = vmatpush1.msra.mxu0 0.0
    %1216 = vmatprep.subr.mxu0 0.0
    %1217 = vmatpush1.msra.mxu0 0.0
    %1218 = vmatprep.subr.mxu0 0.0
    %1219 = vmatpush1.msra.mxu0 0.0
    %1220 = vmatprep.subr.mxu0 0.0
    %1221 = vmatpush1.msra.mxu0 0.0
    %1222 = vmatprep.mubr.f32.mxu0 0.0
    %1223 = vmatmul.mubr.f32.gmra.mrb[0].mxu0 %v1152
    %v1224 = vpop.f32.mrb[0].mxu0
    %v1225 = vadd.f32 %v1157, %v1224
    %v1226 = vpop.f32.mrb[0].mxu0
    %1227 = vdwg.mxu0
    %1228 = vst [vmem:[%s3] sm:$0x3] %v1225
    // Predicated region
    $region18: #{task_challenger_forward_both.1} parent=1 // pred_check
      _
    $region19: #{task_challenger_forward_both.1} parent=1 // pred_check_branch
      %1230 = sbr.rel (0) target = $region21
    $region20: #{task_challenger_forward_both.1} parent=1 // pred_region
      _
    $region21: #{task_challenger_forward_both.1} parent=1 // pred_fallthru
      _
    // Predicated region
    $region22: #{task_challenger_forward_both.1} parent=1 // pred_check
      _
    $region23: #{task_challenger_forward_both.1} parent=1 // pred_check_branch
      %1232 = sbr.rel (0) target = $region25
    $region24: #{task_challenger_forward_both.1} parent=1 // pred_region
      _
    $region25: #{task_challenger_forward_both.1} parent=1 // pred_fallthru
      _
    %1233 = vsyncpa [#allocation3], 1

</llo_original>
